<compile_context>
chip_gen: v5e
topology: v5e:2x2
jax: 0.10.0
libtpu: 0.0.40
codegen_flags: <defaults>
</compile_context>

<pallas_src>
import functools

import numpy as np
import jax
import jax.numpy as jnp
from jax import lax
from jax.experimental import pallas as pl
from jax.experimental.pallas import tpu as pltpu

EPS = 1e-5            # nn.GroupNorm default eps
NUM_GROUPS = 32       # nn.GroupNorm(32, channels)
HIGHEST = lax.Precision.HIGHEST   # only for the tiny exact group-stat dots


def attention_block_kernel(x_ref, m_ref, mt_ref, wqkv_ref, bqkv_ref, wp_ref, bp_ref,
                           o_ref, *, c, pack):
    xp = x_ref[...]                                   # (BT, HW/pack, pack*C) f32, lane-dense
    bt, hwp, _ = xp.shape
    hw = hwp * pack

    # Unpack to (BT, HW, C).  Positions land in a fixed permutation (chunk-major); every op
    # below is per-position or a full reduction over positions, and the store applies the exact
    # inverse, so the HBM result is identical to the natural ordering.
    if pack > 1:
        x = jnp.concatenate([xp[:, :, i * c:(i + 1) * c] for i in range(pack)], axis=1)
    else:
        x = xp                                        # (BT, HW, C)

    # ---------- GroupNorm(32, C) statistics, fully in f32 ----------
    # (affine gamma/beta is folded into the QKV weights on the host; m already carries 1/(HW*cg))
    s = jnp.sum(x, axis=1)                            # (BT, C)
    ss = jnp.sum(x * x, axis=1)                       # (BT, C)
    mean_g = jnp.dot(s, m_ref[...], preferred_element_type=jnp.float32,
                     precision=HIGHEST)               # (BT, G)
    ex2_g = jnp.dot(ss, m_ref[...], preferred_element_type=jnp.float32,
                    precision=HIGHEST)                # (BT, G)
    var_g = ex2_g - mean_g * mean_g
    inv_g = lax.rsqrt(var_g + EPS)
    mean_c = jnp.dot(mean_g, mt_ref[...], preferred_element_type=jnp.float32,
                     precision=HIGHEST)               # (BT, C)  exact scatter-back
    inv_c = jnp.dot(inv_g, mt_ref[...], preferred_element_type=jnp.float32,
                    precision=HIGHEST)                # (BT, C)
    xn = (x - mean_c[:, None, :]) * inv_c[:, None, :]

    # ---------- Q/K/V projections: three dots sharing the same LHS (bf16 ops, f32 acc) ----------
    xn2 = xn.reshape(bt * hw, c).astype(jnp.bfloat16)

    def qkv_proj(i):
        y = jnp.dot(xn2, wqkv_ref[i], preferred_element_type=jnp.float32) + bqkv_ref[i]
        return y.reshape(bt, hw, c)

    q = qkv_proj(0)                                   # softmax scale C**-0.5 folded into wq/bq
    k = qkv_proj(1)
    v = qkv_proj(2)

    # ---------- scaled dot-product attention over the HW positions ----------
    scores = jnp.einsum('bqc,bkc->bqk', q.astype(jnp.bfloat16), k.astype(jnp.bfloat16),
                        preferred_element_type=jnp.float32)            # (BT, HW, HW)
    smax = jnp.max(scores, axis=-1, keepdims=True)
    p = jnp.exp(scores - smax)
    denom = jnp.sum(p, axis=-1, keepdims=True)
    p = p * pl.reciprocal(denom, approx=True)                          # softmax, f32
    attn = jnp.einsum('bqk,bkc->bqc', p.astype(jnp.bfloat16), v.astype(jnp.bfloat16),
                      preferred_element_type=jnp.float32)              # (BT, HW, C)

    # ---------- output projection + residual ----------
    proj = jnp.dot(attn.reshape(bt * hw, c).astype(jnp.bfloat16), wp_ref[...],
                   preferred_element_type=jnp.float32) + bp_ref[...]   # (BT*HW, C)
    out = x + proj.reshape(bt, hw, c)

    # Repack to the lane-dense layout (exact inverse of the unpack above).
    if pack > 1:
        o_ref[...] = jnp.concatenate(
            [out[:, i * hwp:(i + 1) * hwp, :] for i in range(pack)], axis=2)
    else:
        o_ref[...] = out


def _group_matrices(c, g, hw):
    """Channel->group membership matrices (built on host).

    m  : (C, G) with 1/(HW*cg) at member positions  -> s @ m gives per-group means directly.
    mt : (G, C) 0/1 transpose                        -> exact scatter-back of group stats.
    """
    cg = c // g
    m = np.zeros((c, g), np.float32)
    for ch in range(c):
        m[ch, ch // cg] = 1.0
    m_scaled = m / float(hw * cg)
    return jnp.asarray(m_scaled), jnp.asarray(np.ascontiguousarray(m.T))


def _tensorcores_per_chip():
    # v7x has 2 TensorCores per chip; v5e / v6e have 1.
    try:
        kind = jax.devices()[0].device_kind.lower()
    except Exception:
        return 1
    return 2 if "v7" in kind else 1


def _default_block_b(n):
    tc = _tensorcores_per_chip()
    if tc > 1 and n % tc == 0:
        return n // tc       # one grid step per TensorCore (parallel batch axis on v7x)
    return n                 # single TC: whole batch in one grid step (no per-step overhead)


def attention_block(x_nchw, params, *, block_b=None):
    N, C, H, W = x_nchw.shape
    assert C % NUM_GROUPS == 0
    hw = H * W

    if block_b is None:
        block_b = _default_block_b(N)
    assert N % block_b == 0

    # Lane-dense packing: fold `pack` spatial positions into one 128-lane row when C < 128.
    if C < 128 and 128 % C == 0 and hw % (128 // C) == 0:
        pack = 128 // C
    else:
        pack = 1
    hwp = hw // pack
    cl = pack * C

    # NCHW -> NHWC -> (N, HW//pack, pack*C); the reshape is a free row-major view change.
    x = jnp.transpose(x_nchw, (0, 2, 3, 1)).astype(jnp.float32).reshape(N, hwp, cl)

    m, mt = _group_matrices(C, NUM_GROUPS, hw)

    # Fold GroupNorm affine (gamma, beta) and softmax scale C**-0.5 into the QKV weights/biases.
    # Exact f32 fold (HIGHEST for the bias fold) BEFORE the bf16 cast of the weights.
    scale = C ** -0.5
    g_col = params["g"].reshape(C, 1)          # per-input-channel row scale
    be = params["be"]                          # (1, C)

    def fold(w, b, extra=1.0):
        wf = (g_col * w) * extra
        bf = (jnp.dot(be, w, precision=HIGHEST) + b) * extra
        return wf, bf

    wq_f, bq_f = fold(params["wq"], params["bq"], scale)
    wk_f, bk_f = fold(params["wk"], params["bk"])
    wv_f, bv_f = fold(params["wv"], params["bv"])
    wqkv = jnp.stack([wq_f, wk_f, wv_f], axis=0).astype(jnp.bfloat16)   # (3, C, C) bf16
    bqkv = jnp.stack([bq_f, bk_f, bv_f], axis=0)                        # (3, 1, C) f32
    wp = params["wp"].astype(jnp.bfloat16)
    bp = params["bp"]

    inputs = (x, m, mt, wqkv, bqkv, wp, bp)

    def const_spec(a):
        nd = a.ndim
        return pl.BlockSpec(a.shape, lambda n, _nd=nd: (0,) * _nd)

    in_specs = [pl.BlockSpec((block_b, hwp, cl), lambda n: (n, 0, 0))]
    in_specs += [const_spec(a) for a in inputs[1:]]

    # Scheduler hint: ~10 MFLOP total, a couple MiB of HBM traffic — launch/latency bound.
    flops = 8 * N * hw * C * C + 4 * N * hw * hw * C
    transcendentals = N * hw * hw + N * NUM_GROUPS
    bytes_accessed = 2 * N * hw * C * 4 + 4 * C * C * 2 + 8 * C * 4
    cost = pl.CostEstimate(flops=flops, transcendentals=transcendentals,
                           bytes_accessed=bytes_accessed)

    kern = functools.partial(attention_block_kernel, c=C, pack=pack)

    out = pl.pallas_call(
        kern,
        out_shape=jax.ShapeDtypeStruct((N, hwp, cl), jnp.float32),
        grid_spec=pltpu.PrefetchScalarGridSpec(
            num_scalar_prefetch=0,
            grid=(N // block_b,),
            in_specs=in_specs,
            out_specs=pl.BlockSpec((block_b, hwp, cl), lambda n: (n, 0, 0)),
        ),
        compiler_params=pltpu.CompilerParams(dimension_semantics=("parallel",)),
        cost_estimate=cost,
    )(*inputs)

    return jnp.transpose(out.reshape(N, H, W, C), (0, 3, 1, 2))          # back to NCHW


# ---------------- deterministic synthetic parameters ------------------------

def init_params(key, c):
    ks = jax.random.split(key, 10)

    def rnd(k, shape, scale):
        return scale * jax.random.normal(k, shape, jnp.float32)

    sc = 1.0 / np.sqrt(c)
    return {
        "g": 1.0 + 0.1 * jax.random.normal(ks[0], (1, c), jnp.float32),
        "be": rnd(ks[1], (1, c), 0.1),
        "wq": rnd(ks[2], (c, c), sc), "bq": rnd(ks[3], (1, c), 0.05),
        "wk": rnd(ks[4], (c, c), sc), "bk": rnd(ks[5], (1, c), 0.05),
        "wv": rnd(ks[6], (c, c), sc), "bv": rnd(ks[7], (1, c), 0.05),
        "wp": rnd(ks[8], (c, c), sc), "bp": rnd(ks[9], (1, c), 0.05),
    }


# ---------------- pure-JAX reference (f32, HIGHEST) --------------------------

def ref_forward(x_nchw, params):
    N, C, H, W = x_nchw.shape
    hw = H * W
    x = jnp.transpose(x_nchw, (0, 2, 3, 1)).reshape(N, hw, C).astype(jnp.float32)

    cg = C // NUM_GROUPS
    xg = x.reshape(N, hw, NUM_GROUPS, cg)
    mean = xg.mean(axis=(1, 3), keepdims=True)
    var = ((xg - mean) ** 2).mean(axis=(1, 3), keepdims=True)
    xn = ((xg - mean) * lax.rsqrt(var + EPS)).reshape(N, hw, C)
    xn = xn * params["g"].reshape(1, 1, C) + params["be"].reshape(1, 1, C)

    def lin(h, w, b):
        return jnp.einsum("bsc,cd->bsd", h, w, precision=HIGHEST) + b.reshape(1, 1, C)

    q = lin(xn, params["wq"], params["bq"])
    k = lin(xn, params["wk"], params["bk"])
    v = lin(xn, params["wv"], params["bv"])
    scores = jnp.einsum("bqc,bkc->bqk", q, k, precision=HIGHEST) * (C ** -0.5)
    p = jax.nn.softmax(scores, axis=-1)
    attn = jnp.einsum("bqk,bkc->bqc", p, v, precision=HIGHEST)
    proj = lin(attn, params["wp"], params["bp"])
    out = x + proj
    return jnp.transpose(out.reshape(N, H, W, C), (0, 3, 1, 2))


if __name__ == "__main__":
    # GroupNorm(32, C) requires C % 32 == 0 -> C = 64; batch = 4 (the module's batch_size)
    N, C, H, W = 4, 64, 8, 8
    key = jax.random.PRNGKey(0)
    kx, kp = jax.random.split(key)
    x = jax.random.normal(kx, (N, C, H, W), jnp.float32)
    params = init_params(kp, C)

    out = jax.block_until_ready(attention_block(x, params))
    ref = jax.block_until_ready(ref_forward(x, params))
    np.testing.assert_allclose(np.asarray(out), np.asarray(ref), rtol=2e-2, atol=2e-2)
    print("KERNEL_OK")
</pallas_src>

<mosaic_0001>
module attributes {stable_mosaic.version = 11 : i64} {
  func.func @attention_block_kernel(%arg0: i32, %arg1: memref<4x32x128xf32, #tpu.memory_space<vmem>>, %arg2: memref<64x32xf32, #tpu.memory_space<vmem>>, %arg3: memref<32x64xf32, #tpu.memory_space<vmem>>, %arg4: memref<3x64x64xbf16, #tpu.memory_space<vmem>>, %arg5: memref<3x1x64xf32, #tpu.memory_space<vmem>>, %arg6: memref<64x64xbf16, #tpu.memory_space<vmem>>, %arg7: memref<1x64xf32, #tpu.memory_space<vmem>>, %arg8: memref<4x32x128xf32, #tpu.memory_space<vmem>>) attributes {dimension_semantics = [#tpu.dimension_semantics<parallel>], iteration_bounds = array<i64: 1>, scalar_prefetch = 0 : i64, scratch_operands = 0 : i64, tpu.core_type = #tpu.core_type<tc>, window_params = [{transform_indices = @transform_0, window_bounds = array<i64: 4, 32, 128>}, {pipeline_mode = #tpu.pipeline_mode<synchronous>, transform_indices = @transform_1, window_bounds = array<i64: 64, 32>}, {pipeline_mode = #tpu.pipeline_mode<synchronous>, transform_indices = @transform_2, window_bounds = array<i64: 32, 64>}, {pipeline_mode = #tpu.pipeline_mode<synchronous>, transform_indices = @transform_3, window_bounds = array<i64: 3, 64, 64>}, {pipeline_mode = #tpu.pipeline_mode<synchronous>, transform_indices = @transform_4, window_bounds = array<i64: 3, 1, 64>}, {pipeline_mode = #tpu.pipeline_mode<synchronous>, transform_indices = @transform_5, window_bounds = array<i64: 64, 64>}, {pipeline_mode = #tpu.pipeline_mode<synchronous>, transform_indices = @transform_6, window_bounds = array<i64: 1, 64>}, {transform_indices = @transform_7, window_bounds = array<i64: 4, 32, 128>}]} {
    %c0 = arith.constant 0 : index
    %c0_0 = arith.constant 0 : index
    %c0_1 = arith.constant 0 : index
    %0 = vector.load %arg1[%c0, %c0_0, %c0_1] : memref<4x32x128xf32, #tpu.memory_space<vmem>>, vector<4x32x128xf32>
    %1 = vector.extract_strided_slice %0 {offsets = [0, 0, 0], sizes = [4, 32, 64], strides = [1, 1, 1]} : vector<4x32x128xf32> to vector<4x32x64xf32>
    %2 = vector.extract_strided_slice %0 {offsets = [0, 0, 64], sizes = [4, 32, 64], strides = [1, 1, 1]} : vector<4x32x128xf32> to vector<4x32x64xf32>
    %3 = tpu.concatenate %1, %2 in 1 : vector<4x32x64xf32>, vector<4x32x64xf32> -> vector<4x64x64xf32>
    %cst = arith.constant dense<0.000000e+00> : vector<4x64xf32>
    %4 = vector.multi_reduction <add>, %3, %cst [1] : vector<4x64x64xf32> to vector<4x64xf32>
    %5 = arith.mulf %3, %3 : vector<4x64x64xf32>
    %cst_2 = arith.constant dense<0.000000e+00> : vector<4x64xf32>
    %6 = vector.multi_reduction <add>, %5, %cst_2 [1] : vector<4x64x64xf32> to vector<4x64xf32>
    %c0_3 = arith.constant 0 : index
    %c0_4 = arith.constant 0 : index
    %7 = vector.load %arg2[%c0_3, %c0_4] : memref<64x32xf32, #tpu.memory_space<vmem>>, vector<64x32xf32>
    %cst_5 = arith.constant dense<0.000000e+00> : vector<4x32xf32>
    %8 = tpu.matmul %4, %7, %cst_5 {dimension_numbers = #tpu.dot_dimension_numbers<[1], [0], [0], [1], [0, 0, 1, 1], [], []>, precision = #tpu.contract_precision<fp32>} : vector<4x64xf32>, vector<64x32xf32>, vector<4x32xf32> -> vector<4x32xf32>
    %c0_6 = arith.constant 0 : index
    %c0_7 = arith.constant 0 : index
    %9 = vector.load %arg2[%c0_6, %c0_7] : memref<64x32xf32, #tpu.memory_space<vmem>>, vector<64x32xf32>
    %cst_8 = arith.constant dense<0.000000e+00> : vector<4x32xf32>
    %10 = tpu.matmul %6, %9, %cst_8 {dimension_numbers = #tpu.dot_dimension_numbers<[1], [0], [0], [1], [0, 0, 1, 1], [], []>, precision = #tpu.contract_precision<fp32>} : vector<4x64xf32>, vector<64x32xf32>, vector<4x32xf32> -> vector<4x32xf32>
    %11 = arith.mulf %8, %8 : vector<4x32xf32>
    %12 = arith.subf %10, %11 : vector<4x32xf32>
    %cst_9 = arith.constant 9.99999974E-6 : f32
    %13 = vector.broadcast %cst_9 : f32 to vector<4x32xf32>
    %14 = arith.addf %12, %13 : vector<4x32xf32>
    %15 = math.rsqrt %14 : vector<4x32xf32>
    %c0_10 = arith.constant 0 : index
    %c0_11 = arith.constant 0 : index
    %16 = vector.load %arg3[%c0_10, %c0_11] : memref<32x64xf32, #tpu.memory_space<vmem>>, vector<32x64xf32>
    %cst_12 = arith.constant dense<0.000000e+00> : vector<4x64xf32>
    %17 = tpu.matmul %8, %16, %cst_12 {dimension_numbers = #tpu.dot_dimension_numbers<[1], [0], [0], [1], [0, 0, 1, 1], [], []>, precision = #tpu.contract_precision<fp32>} : vector<4x32xf32>, vector<32x64xf32>, vector<4x64xf32> -> vector<4x64xf32>
    %c0_13 = arith.constant 0 : index
    %c0_14 = arith.constant 0 : index
    %18 = vector.load %arg3[%c0_13, %c0_14] : memref<32x64xf32, #tpu.memory_space<vmem>>, vector<32x64xf32>
    %cst_15 = arith.constant dense<0.000000e+00> : vector<4x64xf32>
    %19 = tpu.matmul %15, %18, %cst_15 {dimension_numbers = #tpu.dot_dimension_numbers<[1], [0], [0], [1], [0, 0, 1, 1], [], []>, precision = #tpu.contract_precision<fp32>} : vector<4x32xf32>, vector<32x64xf32>, vector<4x64xf32> -> vector<4x64xf32>
    %20 = vector.shape_cast %17 : vector<4x64xf32> to vector<4x1x64xf32>
    %21 = vector.broadcast %20 : vector<4x1x64xf32> to vector<4x64x64xf32>
    %22 = arith.subf %3, %21 : vector<4x64x64xf32>
    %23 = vector.shape_cast %19 : vector<4x64xf32> to vector<4x1x64xf32>
    %24 = vector.broadcast %23 : vector<4x1x64xf32> to vector<4x64x64xf32>
    %25 = arith.mulf %22, %24 : vector<4x64x64xf32>
    %26 = vector.shape_cast %25 : vector<4x64x64xf32> to vector<256x64xf32>
    %27 = arith.truncf %26 : vector<256x64xf32> to vector<256x64xbf16>
    %c0_16 = arith.constant 0 : index
    %c0_17 = arith.constant 0 : index
    %c0_18 = arith.constant 0 : index
    %28 = vector.load %arg4[%c0_16, %c0_17, %c0_18] : memref<3x64x64xbf16, #tpu.memory_space<vmem>>, vector<1x64x64xbf16>
    %29 = vector.shape_cast %28 : vector<1x64x64xbf16> to vector<64x64xbf16>
    %cst_19 = arith.constant dense<0.000000e+00> : vector<256x64xf32>
    %30 = tpu.matmul %27, %29, %cst_19 {dimension_numbers = #tpu.dot_dimension_numbers<[1], [0], [0], [1], [0, 0, 1, 1], [], []>} : vector<256x64xbf16>, vector<64x64xbf16>, vector<256x64xf32> -> vector<256x64xf32>
    %c0_20 = arith.constant 0 : index
    %c0_21 = arith.constant 0 : index
    %c0_22 = arith.constant 0 : index
    %31 = vector.load %arg5[%c0_20, %c0_21, %c0_22] : memref<3x1x64xf32, #tpu.memory_space<vmem>>, vector<1x1x64xf32>
    %32 = vector.shape_cast %31 : vector<1x1x64xf32> to vector<1x64xf32>
    %33 = vector.broadcast %32 : vector<1x64xf32> to vector<256x64xf32>
    %34 = arith.addf %30, %33 : vector<256x64xf32>
    %35 = vector.shape_cast %34 : vector<256x64xf32> to vector<4x64x64xf32>
    %c1 = arith.constant 1 : index
    %c0_23 = arith.constant 0 : index
    %c0_24 = arith.constant 0 : index
    %36 = vector.load %arg4[%c1, %c0_23, %c0_24] : memref<3x64x64xbf16, #tpu.memory_space<vmem>>, vector<1x64x64xbf16>
    %37 = vector.shape_cast %36 : vector<1x64x64xbf16> to vector<64x64xbf16>
    %cst_25 = arith.constant dense<0.000000e+00> : vector<256x64xf32>
    %38 = tpu.matmul %27, %37, %cst_25 {dimension_numbers = #tpu.dot_dimension_numbers<[1], [0], [0], [1], [0, 0, 1, 1], [], []>} : vector<256x64xbf16>, vector<64x64xbf16>, vector<256x64xf32> -> vector<256x64xf32>
    %c1_26 = arith.constant 1 : index
    %c0_27 = arith.constant 0 : index
    %c0_28 = arith.constant 0 : index
    %39 = vector.load %arg5[%c1_26, %c0_27, %c0_28] : memref<3x1x64xf32, #tpu.memory_space<vmem>>, vector<1x1x64xf32>
    %40 = vector.shape_cast %39 : vector<1x1x64xf32> to vector<1x64xf32>
    %41 = vector.broadcast %40 : vector<1x64xf32> to vector<256x64xf32>
    %42 = arith.addf %38, %41 : vector<256x64xf32>
    %43 = vector.shape_cast %42 : vector<256x64xf32> to vector<4x64x64xf32>
    %c2 = arith.constant 2 : index
    %c0_29 = arith.constant 0 : index
    %c0_30 = arith.constant 0 : index
    %44 = vector.load %arg4[%c2, %c0_29, %c0_30] : memref<3x64x64xbf16, #tpu.memory_space<vmem>>, vector<1x64x64xbf16>
    %45 = vector.shape_cast %44 : vector<1x64x64xbf16> to vector<64x64xbf16>
    %cst_31 = arith.constant dense<0.000000e+00> : vector<256x64xf32>
    %46 = tpu.matmul %27, %45, %cst_31 {dimension_numbers = #tpu.dot_dimension_numbers<[1], [0], [0], [1], [0, 0, 1, 1], [], []>} : vector<256x64xbf16>, vector<64x64xbf16>, vector<256x64xf32> -> vector<256x64xf32>
    %c2_32 = arith.constant 2 : index
    %c0_33 = arith.constant 0 : index
    %c0_34 = arith.constant 0 : index
    %47 = vector.load %arg5[%c2_32, %c0_33, %c0_34] : memref<3x1x64xf32, #tpu.memory_space<vmem>>, vector<1x1x64xf32>
    %48 = vector.shape_cast %47 : vector<1x1x64xf32> to vector<1x64xf32>
    %49 = vector.broadcast %48 : vector<1x64xf32> to vector<256x64xf32>
    %50 = arith.addf %46, %49 : vector<256x64xf32>
    %51 = vector.shape_cast %50 : vector<256x64xf32> to vector<4x64x64xf32>
    %52 = arith.truncf %35 : vector<4x64x64xf32> to vector<4x64x64xbf16>
    %53 = arith.truncf %43 : vector<4x64x64xf32> to vector<4x64x64xbf16>
    "tpu.trace_start"() <{level = 10 : i32, message = "bqc,bkc->bqk"}> : () -> ()
    %cst_35 = arith.constant dense<0.000000e+00> : vector<4x64x64xf32>
    %54 = tpu.matmul %52, %53, %cst_35 {dimension_numbers = #tpu.dot_dimension_numbers<[2], [2], [1], [1], [0, 0, 0, 1, 1, 1], [0], [0]>} : vector<4x64x64xbf16>, vector<4x64x64xbf16>, vector<4x64x64xf32> -> vector<4x64x64xf32>
    "tpu.trace_stop"() : () -> ()
    %cst_36 = arith.constant dense<0xFF800000> : vector<4x64xf32>
    %55 = vector.multi_reduction <maximumf>, %54, %cst_36 [2] : vector<4x64x64xf32> to vector<4x64xf32>
    %56 = vector.shape_cast %55 : vector<4x64xf32> to vector<4x64x1xf32>
    %57 = vector.broadcast %56 : vector<4x64x1xf32> to vector<4x64x64xf32>
    %58 = arith.subf %54, %57 : vector<4x64x64xf32>
    %59 = math.exp %58 : vector<4x64x64xf32>
    %cst_37 = arith.constant dense<0.000000e+00> : vector<4x64xf32>
    %60 = vector.multi_reduction <add>, %59, %cst_37 [2] : vector<4x64x64xf32> to vector<4x64xf32>
    %61 = vector.shape_cast %60 : vector<4x64xf32> to vector<4x64x1xf32>
    %62 = tpu.reciprocal %61 {approx = true} : vector<4x64x1xf32> -> vector<4x64x1xf32>
    %63 = vector.broadcast %62 : vector<4x64x1xf32> to vector<4x64x64xf32>
    %64 = arith.mulf %59, %63 : vector<4x64x64xf32>
    %65 = arith.truncf %64 : vector<4x64x64xf32> to vector<4x64x64xbf16>
    %66 = arith.truncf %51 : vector<4x64x64xf32> to vector<4x64x64xbf16>
    "tpu.trace_start"() <{level = 10 : i32, message = "bqk,bkc->bqc"}> : () -> ()
    %cst_38 = arith.constant dense<0.000000e+00> : vector<4x64x64xf32>
    %67 = tpu.matmul %65, %66, %cst_38 {dimension_numbers = #tpu.dot_dimension_numbers<[2], [1], [1], [2], [0, 0, 0, 1, 1, 2], [0], [0]>} : vector<4x64x64xbf16>, vector<4x64x64xbf16>, vector<4x64x64xf32> -> vector<4x64x64xf32>
    "tpu.trace_stop"() : () -> ()
    %68 = vector.shape_cast %67 : vector<4x64x64xf32> to vector<256x64xf32>
    %69 = arith.truncf %68 : vector<256x64xf32> to vector<256x64xbf16>
    %c0_39 = arith.constant 0 : index
    %c0_40 = arith.constant 0 : index
    %70 = vector.load %arg6[%c0_39, %c0_40] : memref<64x64xbf16, #tpu.memory_space<vmem>>, vector<64x64xbf16>
    %cst_41 = arith.constant dense<0.000000e+00> : vector<256x64xf32>
    %71 = tpu.matmul %69, %70, %cst_41 {dimension_numbers = #tpu.dot_dimension_numbers<[1], [0], [0], [1], [0, 0, 1, 1], [], []>} : vector<256x64xbf16>, vector<64x64xbf16>, vector<256x64xf32> -> vector<256x64xf32>
    %c0_42 = arith.constant 0 : index
    %c0_43 = arith.constant 0 : index
    %72 = vector.load %arg7[%c0_42, %c0_43] : memref<1x64xf32, #tpu.memory_space<vmem>>, vector<1x64xf32>
    %73 = vector.broadcast %72 : vector<1x64xf32> to vector<256x64xf32>
    %74 = arith.addf %71, %73 : vector<256x64xf32>
    %75 = vector.shape_cast %74 : vector<256x64xf32> to vector<4x64x64xf32>
    %76 = arith.addf %3, %75 : vector<4x64x64xf32>
    %77 = vector.extract_strided_slice %76 {offsets = [0, 0, 0], sizes = [4, 32, 64], strides = [1, 1, 1]} : vector<4x64x64xf32> to vector<4x32x64xf32>
    %78 = vector.extract_strided_slice %76 {offsets = [0, 32, 0], sizes = [4, 32, 64], strides = [1, 1, 1]} : vector<4x64x64xf32> to vector<4x32x64xf32>
    %79 = tpu.concatenate %77, %78 in 2 : vector<4x32x64xf32>, vector<4x32x64xf32> -> vector<4x32x128xf32>
    %c0_44 = arith.constant 0 : index
    %c0_45 = arith.constant 0 : index
    %c0_46 = arith.constant 0 : index
    %80 = vector.load %arg8[%c0_44, %c0_45, %c0_46] : memref<4x32x128xf32, #tpu.memory_space<vmem>>, vector<4x32x128xf32>
    tpu.vector_store %arg8[%c0_44, %c0_45, %c0_46], %79 {strides = array<i32>} : memref<4x32x128xf32, #tpu.memory_space<vmem>>, vector<4x32x128xf32>,
    return
  }
  func.func @transform_0(%arg0: i32) -> (i32, i32, i32) {
    %c0_i32 = arith.constant 0 : i32
    %c0_i32_0 = arith.constant 0 : i32
    %c0_i32_1 = arith.constant 0 : i32
    return %arg0, %c0_i32, %c0_i32_0 : i32, i32, i32
  }
  func.func @transform_1(%arg0: i32) -> (i32, i32) {
    %c0_i32 = arith.constant 0 : i32
    %c0_i32_0 = arith.constant 0 : i32
    %c0_i32_1 = arith.constant 0 : i32
    return %c0_i32, %c0_i32_0 : i32, i32
  }
  func.func @transform_2(%arg0: i32) -> (i32, i32) {
    %c0_i32 = arith.constant 0 : i32
    %c0_i32_0 = arith.constant 0 : i32
    %c0_i32_1 = arith.constant 0 : i32
    return %c0_i32, %c0_i32_0 : i32, i32
  }
  func.func @transform_3(%arg0: i32) -> (i32, i32, i32) {
    %c0_i32 = arith.constant 0 : i32
    %c0_i32_0 = arith.constant 0 : i32
    %c0_i32_1 = arith.constant 0 : i32
    %c0_i32_2 = arith.constant 0 : i32
    return %c0_i32, %c0_i32_0, %c0_i32_1 : i32, i32, i32
  }
  func.func @transform_4(%arg0: i32) -> (i32, i32, i32) {
    %c0_i32 = arith.constant 0 : i32
    %c0_i32_0 = arith.constant 0 : i32
    %c0_i32_1 = arith.constant 0 : i32
    %c0_i32_2 = arith.constant 0 : i32
    return %c0_i32, %c0_i32_0, %c0_i32_1 : i32, i32, i32
  }
  func.func @transform_5(%arg0: i32) -> (i32, i32) {
    %c0_i32 = arith.constant 0 : i32
    %c0_i32_0 = arith.constant 0 : i32
    %c0_i32_1 = arith.constant 0 : i32
    return %c0_i32, %c0_i32_0 : i32, i32
  }
  func.func @transform_6(%arg0: i32) -> (i32, i32) {
    %c0_i32 = arith.constant 0 : i32
    %c0_i32_0 = arith.constant 0 : i32
    %c0_i32_1 = arith.constant 0 : i32
    return %c0_i32, %c0_i32_0 : i32, i32
  }
  func.func @transform_7(%arg0: i32) -> (i32, i32, i32) {
    %c0_i32 = arith.constant 0 : i32
    %c0_i32_0 = arith.constant 0 : i32
    %c0_i32_1 = arith.constant 0 : i32
    return %arg0, %c0_i32, %c0_i32_0 : i32, i32, i32
  }
}

</mosaic_0001>

<llo_original>
// kernel: tpu_custom_call.1
$region0: #{tpu_custom_call.1}
  #allocation0 [shape = 'u32[]', space=smem, size = 0x4, offset = 0x4, fixed_abs, tag = 'smem constant byte address 0x4 - core index']
  #allocation1 [shape = 'u32[72,128]{1,0:T(1,128)}', space=vmem, size = 0x9000, scoped, tag = 'internal scratch']
  %s0 = inlined_call_operand.hbm [shape: f32[4,32,128], index: 0, kind: input, shape index: {}]
  %s1 = inlined_call_operand.vmem [shape: f32[64,32], index: 1, kind: input, shape index: {}]
  %s2 = inlined_call_operand.hbm [shape: f32[32,64], index: 2, kind: input, shape index: {}]
  %s3 = inlined_call_operand.vmem [shape: bf16[3,64,64], index: 3, kind: input, shape index: {}]
  %s4 = inlined_call_operand.vmem [shape: f32[3,1,64], index: 4, kind: input, shape index: {}]
  %s5 = inlined_call_operand.hbm [shape: bf16[64,64], index: 5, kind: input, shape index: {}]
  %s6 = inlined_call_operand.vmem [shape: f32[1,64], index: 6, kind: input, shape index: {}]
  %s7 = inlined_call_operand.hbm [shape: f32[4,32,128], index: 7, kind: output, shape index: {}]
  %s8 = sld [smem:[#allocation0]]
  $region50: #{tpu_custom_call.1} parent=0
    _
  %s10 = ssub.s32 1, %s8
  %s11 = scalar_select 0, %s10, %s8
  $region1: #{tpu_custom_call.1} parent=0
    #allocation2 [shape = 'u8[65536]{0}', space=vmem, size = 0x10000, scoped, tag = 'input window, operand 0, single buffered']
    #allocation3 [shape = 's32[1]{0}', space=sflag, size = 0x4, scoped, tag = 'scoped memory for tpu_custom_call.1']
    #allocation4 [shape = 's32[1]{0}', space=sflag, size = 0x4, scoped, tag = 'scoped memory for tpu_custom_call.1']
    #allocation5 [shape = 'u8[16384]{0}', space=vmem, size = 0x4000, scoped, tag = 'input window, operand 2, single buffered']
    #allocation6 [shape = 's32[1]{0}', space=sflag, size = 0x4, scoped, tag = 'scoped memory for tpu_custom_call.1']
    #allocation7 [shape = 'u8[16384]{0}', space=vmem, size = 0x4000, scoped, tag = 'input window, operand 5, single buffered']
    #allocation8 [shape = 'u8[65536]{0}', space=vmem, size = 0x10000, scoped, tag = 'output window, operand 0, single buffered']
    %12 = vsyncpa [#allocation3], 0
    %13 = vsyncpa [#allocation6], 0
    %14 = vsyncpa [#allocation4], 0
    // Predicated region
    $region2: #{tpu_custom_call.1} parent=1 // pred_check
      _
    $region3: #{tpu_custom_call.1} parent=1 // pred_check_branch
      %16 = sbr.rel (0) target = $region5
    $region4: #{tpu_custom_call.1} parent=1 // pred_region
      %18 = vsyncadd [#allocation3], 0
      %s19 = sshll.u32 %s0, 4
      %s20 = int_to_ptr.hbm [resolvable:$true] %s19
      %s21 = sshll.u32 [#allocation2], 4
      %s22 = int_to_ptr.vmem [resolvable:$true] %s21
      %27 = dma.hbm_to_vmem [thread:$0]  %s20, 2048, %s22, [#allocation3], 128, 128, 8
    $region5: #{tpu_custom_call.1} parent=1 // pred_fallthru
      _
    // Predicated region
    $region6: #{tpu_custom_call.1} parent=1 // pred_check
      _
    $region7: #{tpu_custom_call.1} parent=1 // pred_check_branch
      %29 = sbr.rel (0) target = $region9
    $region8: #{tpu_custom_call.1} parent=1 // pred_region
      _
    $region9: #{tpu_custom_call.1} parent=1 // pred_fallthru
      _
    // Predicated region
    $region10: #{tpu_custom_call.1} parent=1 // pred_check
      _
    $region11: #{tpu_custom_call.1} parent=1 // pred_check_branch
      %31 = sbr.rel (0) target = $region13
    $region12: #{tpu_custom_call.1} parent=1 // pred_region
      %33 = vsyncadd [#allocation6], 0
      %s34 = sshll.u32 %s2, 4
      %s35 = int_to_ptr.hbm [resolvable:$true] %s34
      %s36 = sshll.u32 [#allocation5], 4
      %s37 = int_to_ptr.vmem [resolvable:$true] %s36
      %42 = dma.hbm_to_vmem [thread:$0]  %s35, 512, %s37, [#allocation6], 128, 128, 8
    $region13: #{tpu_custom_call.1} parent=1 // pred_fallthru
      _
    // Predicated region
    $region14: #{tpu_custom_call.1} parent=1 // pred_check
      _
    $region15: #{tpu_custom_call.1} parent=1 // pred_check_branch
      %44 = sbr.rel (0) target = $region17
    $region16: #{tpu_custom_call.1} parent=1 // pred_region
      _
    $region17: #{tpu_custom_call.1} parent=1 // pred_fallthru
      _
    // Predicated region
    $region18: #{tpu_custom_call.1} parent=1 // pred_check
      _
    $region19: #{tpu_custom_call.1} parent=1 // pred_check_branch
      %46 = sbr.rel (0) target = $region21
    $region20: #{tpu_custom_call.1} parent=1 // pred_region
      _
    $region21: #{tpu_custom_call.1} parent=1 // pred_fallthru
      _
    // Predicated region
    $region22: #{tpu_custom_call.1} parent=1 // pred_check
      _
    $region23: #{tpu_custom_call.1} parent=1 // pred_check_branch
      %48 = sbr.rel (0) target = $region25
    $region24: #{tpu_custom_call.1} parent=1 // pred_region
      %50 = vsyncadd [#allocation6], 0
      %s51 = sshll.u32 %s5, 4
      %s52 = int_to_ptr.hbm [resolvable:$true] %s51
      %s53 = sshll.u32 [#allocation7], 4
      %s54 = int_to_ptr.vmem [resolvable:$true] %s53
      %59 = dma.hbm_to_vmem [thread:$0]  %s52, 512, %s54, [#allocation6], 64, 64, 4
    $region25: #{tpu_custom_call.1} parent=1 // pred_fallthru
      _
    // Predicated region
    $region26: #{tpu_custom_call.1} parent=1 // pred_check
      _
    $region27: #{tpu_custom_call.1} parent=1 // pred_check_branch
      %61 = sbr.rel (0) target = $region29
    $region28: #{tpu_custom_call.1} parent=1 // pred_region
      _
    $region29: #{tpu_custom_call.1} parent=1 // pred_fallthru
      _
    // Predicated region
    $region30: #{tpu_custom_call.1} parent=1 // pred_check
      _
    $region31: #{tpu_custom_call.1} parent=1 // pred_check_branch
      %63 = sbr.rel (0) target = $region33
    $region32: #{tpu_custom_call.1} parent=1 // pred_region
      %65 = dma.done [#allocation3], 2048
    $region33: #{tpu_custom_call.1} parent=1 // pred_fallthru
      _
    // Predicated region
    $region34: #{tpu_custom_call.1} parent=1 // pred_check
      _
    $region35: #{tpu_custom_call.1} parent=1 // pred_check_branch
      %67 = sbr.rel (0) target = $region37
    $region36: #{tpu_custom_call.1} parent=1 // pred_region
      %69 = dma.done [#allocation6], 512
    $region37: #{tpu_custom_call.1} parent=1 // pred_fallthru
      _
    // Predicated region
    $region38: #{tpu_custom_call.1} parent=1 // pred_check
      _
    $region39: #{tpu_custom_call.1} parent=1 // pred_check_branch
      %71 = sbr.rel (0) target = $region41
    $region40: #{tpu_custom_call.1} parent=1 // pred_region
      %73 = dma.done [#allocation6], 512
    $region41: #{tpu_custom_call.1} parent=1 // pred_fallthru
      _
    %v75 = vld [vmem:[#allocation2] sm:$0xff]
    %v76 = vld [vmem:[#allocation2 + $0x8] sm:$0xff]
    %v77 = vld [vmem:[#allocation2 + $0x10] sm:$0xff]
    %v78 = vld [vmem:[#allocation2 + $0x18] sm:$0xff]
    %v79 = vld [vmem:[#allocation2 + $0x20] sm:$0xff]
    %v80 = vld [vmem:[#allocation2 + $0x28] sm:$0xff]
    %v81 = vld [vmem:[#allocation2 + $0x30] sm:$0xff]
    %v82 = vld [vmem:[#allocation2 + $0x38] sm:$0xff]
    %v83 = vld [vmem:[#allocation2 + $0x40] sm:$0xff]
    %v84 = vld [vmem:[#allocation2 + $0x48] sm:$0xff]
    %v85 = vld [vmem:[#allocation2 + $0x50] sm:$0xff]
    %v86 = vld [vmem:[#allocation2 + $0x58] sm:$0xff]
    %v87 = vld [vmem:[#allocation2 + $0x60] sm:$0xff]
    %v88 = vld [vmem:[#allocation2 + $0x68] sm:$0xff]
    %v89 = vld [vmem:[#allocation2 + $0x70] sm:$0xff]
    %v90 = vld [vmem:[#allocation2 + $0x78] sm:$0xff]
    %107 = vrot.lane.b32.xlu0 %v75, 64
    %v108 = vpop.permute.xlu0 %107
    %109 = vrot.lane.b32.xlu0 %v76, 64
    %v110 = vpop.permute.xlu0 %109
    %111 = vrot.lane.b32.xlu0 %v77, 64
    %v112 = vpop.permute.xlu0 %111
    %113 = vrot.lane.b32.xlu0 %v78, 64
    %v114 = vpop.permute.xlu0 %113
    %115 = vrot.lane.b32.xlu0 %v79, 64
    %v116 = vpop.permute.xlu0 %115
    %117 = vrot.lane.b32.xlu0 %v80, 64
    %v118 = vpop.permute.xlu0 %117
    %119 = vrot.lane.b32.xlu0 %v81, 64
    %v120 = vpop.permute.xlu0 %119
    %121 = vrot.lane.b32.xlu0 %v82, 64
    %v122 = vpop.permute.xlu0 %121
    %123 = vrot.lane.b32.xlu0 %v83, 64
    %v124 = vpop.permute.xlu0 %123
    %125 = vrot.lane.b32.xlu0 %v84, 64
    %v126 = vpop.permute.xlu0 %125
    %127 = vrot.lane.b32.xlu0 %v85, 64
    %v128 = vpop.permute.xlu0 %127
    %129 = vrot.lane.b32.xlu0 %v86, 64
    %v130 = vpop.permute.xlu0 %129
    %131 = vrot.lane.b32.xlu0 %v87, 64
    %v132 = vpop.permute.xlu0 %131
    %133 = vrot.lane.b32.xlu0 %v88, 64
    %v134 = vpop.permute.xlu0 %133
    %135 = vrot.lane.b32.xlu0 %v89, 64
    %v136 = vpop.permute.xlu0 %135
    %137 = vrot.lane.b32.xlu0 %v90, 64
    %v138 = vpop.permute.xlu0 %137
    %vm155 = vcmask 523264
    %v156 = vsel %vm155, %v75, 0.0
    %v157 = vsel %vm155, %v76, 0.0
    %v158 = vadd.f32 %v156, %v157
    %v159 = vsel %vm155, %v77, 0.0
    %v160 = vadd.f32 %v158, %v159
    %v161 = vsel %vm155, %v78, 0.0
    %v162 = vadd.f32 %v160, %v161
    %v163 = vsel %vm155, %v108, 0.0
    %v164 = vadd.f32 %v162, %v163
    %v165 = vsel %vm155, %v110, 0.0
    %v166 = vadd.f32 %v164, %v165
    %v167 = vsel %vm155, %v112, 0.0
    %v168 = vadd.f32 %v166, %v167
    %v169 = vsel %vm155, %v114, 0.0
    %v170 = vadd.f32 %v168, %v169
    %v171 = vrot.slane %v170, 4
    %v172 = vadd.f32 %v170, %v171
    %v173 = vrot.slane %v172, 2
    %v174 = vadd.f32 %v172, %v173
    %v175 = vrot.slane %v174, 1
    %v176 = vadd.f32 %v174, %v175
    %v177 = vsel %vm155, %v79, 0.0
    %v178 = vsel %vm155, %v80, 0.0
    %v179 = vadd.f32 %v177, %v178
    %v180 = vsel %vm155, %v81, 0.0
    %v181 = vadd.f32 %v179, %v180
    %v182 = vsel %vm155, %v82, 0.0
    %v183 = vadd.f32 %v181, %v182
    %v184 = vsel %vm155, %v116, 0.0
    %v185 = vadd.f32 %v183, %v184
    %v186 = vsel %vm155, %v118, 0.0
    %v187 = vadd.f32 %v185, %v186
    %v188 = vsel %vm155, %v120, 0.0
    %v189 = vadd.f32 %v187, %v188
    %v190 = vsel %vm155, %v122, 0.0
    %v191 = vadd.f32 %v189, %v190
    %v192 = vrot.slane %v191, 4
    %v193 = vadd.f32 %v191, %v192
    %v194 = vrot.slane %v193, 2
    %v195 = vadd.f32 %v193, %v194
    %v196 = vrot.slane %v195, 1
    %v197 = vadd.f32 %v195, %v196
    %v198 = vsel %vm155, %v83, 0.0
    %v199 = vsel %vm155, %v84, 0.0
    %v200 = vadd.f32 %v198, %v199
    %v201 = vsel %vm155, %v85, 0.0
    %v202 = vadd.f32 %v200, %v201
    %v203 = vsel %vm155, %v86, 0.0
    %v204 = vadd.f32 %v202, %v203
    %v205 = vsel %vm155, %v124, 0.0
    %v206 = vadd.f32 %v204, %v205
    %v207 = vsel %vm155, %v126, 0.0
    %v208 = vadd.f32 %v206, %v207
    %v209 = vsel %vm155, %v128, 0.0
    %v210 = vadd.f32 %v208, %v209
    %v211 = vsel %vm155, %v130, 0.0
    %v212 = vadd.f32 %v210, %v211
    %v213 = vrot.slane %v212, 4
    %v214 = vadd.f32 %v212, %v213
    %v215 = vrot.slane %v214, 2
    %v216 = vadd.f32 %v214, %v215
    %v217 = vrot.slane %v216, 1
    %v218 = vadd.f32 %v216, %v217
    %v219 = vsel %vm155, %v87, 0.0
    %v220 = vsel %vm155, %v88, 0.0
    %v221 = vadd.f32 %v219, %v220
    %v222 = vsel %vm155, %v89, 0.0
    %v223 = vadd.f32 %v221, %v222
    %v224 = vsel %vm155, %v90, 0.0
    %v225 = vadd.f32 %v223, %v224
    %v226 = vsel %vm155, %v132, 0.0
    %v227 = vadd.f32 %v225, %v226
    %v228 = vsel %vm155, %v134, 0.0
    %v229 = vadd.f32 %v227, %v228
    %v230 = vsel %vm155, %v136, 0.0
    %v231 = vadd.f32 %v229, %v230
    %v232 = vsel %vm155, %v138, 0.0
    %v233 = vadd.f32 %v231, %v232
    %v234 = vrot.slane %v233, 4
    %v235 = vadd.f32 %v233, %v234
    %v236 = vrot.slane %v235, 2
    %v237 = vadd.f32 %v235, %v236
    %v238 = vrot.slane %v237, 1
    %v239 = vadd.f32 %v237, %v238
    %v240 = vmul.f32 %v75, %v75
    %v241 = vmul.f32 %v76, %v76
    %v242 = vmul.f32 %v77, %v77
    %v243 = vmul.f32 %v78, %v78
    %v244 = vmul.f32 %v108, %v108
    %v245 = vmul.f32 %v110, %v110
    %v246 = vmul.f32 %v112, %v112
    %v247 = vmul.f32 %v114, %v114
    %v248 = vmul.f32 %v79, %v79
    %v249 = vmul.f32 %v80, %v80
    %v250 = vmul.f32 %v81, %v81
    %v251 = vmul.f32 %v82, %v82
    %v252 = vmul.f32 %v116, %v116
    %v253 = vmul.f32 %v118, %v118
    %v254 = vmul.f32 %v120, %v120
    %v255 = vmul.f32 %v122, %v122
    %v256 = vmul.f32 %v83, %v83
    %v257 = vmul.f32 %v84, %v84
    %v258 = vmul.f32 %v85, %v85
    %v259 = vmul.f32 %v86, %v86
    %v260 = vmul.f32 %v124, %v124
    %v261 = vmul.f32 %v126, %v126
    %v262 = vmul.f32 %v128, %v128
    %v263 = vmul.f32 %v130, %v130
    %v264 = vmul.f32 %v87, %v87
    %v265 = vmul.f32 %v88, %v88
    %v266 = vmul.f32 %v89, %v89
    %v267 = vmul.f32 %v90, %v90
    %v268 = vmul.f32 %v132, %v132
    %v269 = vmul.f32 %v134, %v134
    %v270 = vmul.f32 %v136, %v136
    %v271 = vmul.f32 %v138, %v138
    %v272 = vsel %vm155, %v240, 0.0
    %v273 = vsel %vm155, %v241, 0.0
    %v274 = vadd.f32 %v272, %v273
    %v275 = vsel %vm155, %v242, 0.0
    %v276 = vadd.f32 %v274, %v275
    %v277 = vsel %vm155, %v243, 0.0
    %v278 = vadd.f32 %v276, %v277
    %v279 = vsel %vm155, %v244, 0.0
    %v280 = vadd.f32 %v278, %v279
    %v281 = vsel %vm155, %v245, 0.0
    %v282 = vadd.f32 %v280, %v281
    %v283 = vsel %vm155, %v246, 0.0
    %v284 = vadd.f32 %v282, %v283
    %v285 = vsel %vm155, %v247, 0.0
    %v286 = vadd.f32 %v284, %v285
    %v287 = vrot.slane %v286, 4
    %v288 = vadd.f32 %v286, %v287
    %v289 = vrot.slane %v288, 2
    %v290 = vadd.f32 %v288, %v289
    %v291 = vrot.slane %v290, 1
    %v292 = vadd.f32 %v290, %v291
    %v293 = vsel %vm155, %v248, 0.0
    %v294 = vsel %vm155, %v249, 0.0
    %v295 = vadd.f32 %v293, %v294
    %v296 = vsel %vm155, %v250, 0.0
    %v297 = vadd.f32 %v295, %v296
    %v298 = vsel %vm155, %v251, 0.0
    %v299 = vadd.f32 %v297, %v298
    %v300 = vsel %vm155, %v252, 0.0
    %v301 = vadd.f32 %v299, %v300
    %v302 = vsel %vm155, %v253, 0.0
    %v303 = vadd.f32 %v301, %v302
    %v304 = vsel %vm155, %v254, 0.0
    %v305 = vadd.f32 %v303, %v304
    %v306 = vsel %vm155, %v255, 0.0
    %v307 = vadd.f32 %v305, %v306
    %v308 = vrot.slane %v307, 4
    %v309 = vadd.f32 %v307, %v308
    %v310 = vrot.slane %v309, 2
    %v311 = vadd.f32 %v309, %v310
    %v312 = vrot.slane %v311, 1
    %v313 = vadd.f32 %v311, %v312
    %v314 = vsel %vm155, %v256, 0.0
    %v315 = vsel %vm155, %v257, 0.0
    %v316 = vadd.f32 %v314, %v315
    %v317 = vsel %vm155, %v258, 0.0
    %v318 = vadd.f32 %v316, %v317
    %v319 = vsel %vm155, %v259, 0.0
    %v320 = vadd.f32 %v318, %v319
    %v321 = vsel %vm155, %v260, 0.0
    %v322 = vadd.f32 %v320, %v321
    %v323 = vsel %vm155, %v261, 0.0
    %v324 = vadd.f32 %v322, %v323
    %v325 = vsel %vm155, %v262, 0.0
    %v326 = vadd.f32 %v324, %v325
    %v327 = vsel %vm155, %v263, 0.0
    %v328 = vadd.f32 %v326, %v327
    %v329 = vrot.slane %v328, 4
    %v330 = vadd.f32 %v328, %v329
    %v331 = vrot.slane %v330, 2
    %v332 = vadd.f32 %v330, %v331
    %v333 = vrot.slane %v332, 1
    %v334 = vadd.f32 %v332, %v333
    %v335 = vsel %vm155, %v264, 0.0
    %v336 = vsel %vm155, %v265, 0.0
    %v337 = vadd.f32 %v335, %v336
    %v338 = vsel %vm155, %v266, 0.0
    %v339 = vadd.f32 %v337, %v338
    %v340 = vsel %vm155, %v267, 0.0
    %v341 = vadd.f32 %v339, %v340
    %v342 = vsel %vm155, %v268, 0.0
    %v343 = vadd.f32 %v341, %v342
    %v344 = vsel %vm155, %v269, 0.0
    %v345 = vadd.f32 %v343, %v344
    %v346 = vsel %vm155, %v270, 0.0
    %v347 = vadd.f32 %v345, %v346
    %v348 = vsel %vm155, %v271, 0.0
    %v349 = vadd.f32 %v347, %v348
    %v350 = vrot.slane %v349, 4
    %v351 = vadd.f32 %v349, %v350
    %v352 = vrot.slane %v351, 2
    %v353 = vadd.f32 %v351, %v352
    %v354 = vrot.slane %v353, 1
    %v355 = vadd.f32 %v353, %v354
    %v356 = vld [vmem:[%s1] sm:$0xff]
    %v357 = vld [vmem:[%s1 + $0x8] sm:$0xff]
    %v358 = vld [vmem:[%s1 + $0x10] sm:$0xff]
    %v359 = vld [vmem:[%s1 + $0x18] sm:$0xff]
    %v360 = vld [vmem:[%s1 + $0x20] sm:$0xff]
    %v361 = vld [vmem:[%s1 + $0x28] sm:$0xff]
    %v362 = vld [vmem:[%s1 + $0x30] sm:$0xff]
    %v363 = vld [vmem:[%s1 + $0x38] sm:$0xff]
    %vm368 = vcmask 1041409
    %v369 = vsel %vm368, %v197, %v176
    %vm370 = vcmask 1042434
    %v371 = vsel %vm370, %v218, %v369
    %vm372 = vcmask 1043459
    %v373 = vsel %vm372, %v239, %v371
    %v374 = vsel %vm155, %v373, 0
    %376 = vmatpush.msra.mxu0 0.0
    %377 = vmatpush.msra.mxu0 0.0
    %378 = vmatpush.msra.mxu0 0.0
    %379 = vmatpush.msra.mxu0 0.0
    %380 = vmatpush.msra.mxu0 0.0
    %381 = vmatpush.msra.mxu0 0.0
    %382 = vmatpush.msra.mxu0 0.0
    %383 = vmatpush.msra.mxu0 0.0
    %v384 = vand.u32 %v363, 4294901760
    %385 = vmatpush.msra.mxu0 %v384
    %v386 = vand.u32 %v362, 4294901760
    %387 = vmatpush.msra.mxu0 %v386
    %v388 = vand.u32 %v361, 4294901760
    %389 = vmatpush.msra.mxu0 %v388
    %v390 = vand.u32 %v360, 4294901760
    %391 = vmatpush.msra.mxu0 %v390
    %v392 = vand.u32 %v359, 4294901760
    %393 = vmatpush.msra.mxu0 %v392
    %v394 = vand.u32 %v358, 4294901760
    %395 = vmatpush.msra.mxu0 %v394
    %v396 = vand.u32 %v357, 4294901760
    %397 = vmatpush.msra.mxu0 %v396
    %v398 = vand.u32 %v356, 4294901760
    %399 = vmatpush.msra.mxu0 %v398
    %v400 = vand.u32 %v374, 4294901760
    %v401 = vsub.f32 %v374, %v400
    %v402 = vand.u32 %v401, 4294901760
    %v403 = vsub.f32 %v401, %v402
    %v404 = vand.u32 %v403, 4294901760
    %405 = vmatmul.f32.gmra.mxu0 %v404
    %v406 = vpop.f32.mrf.mxu0
    %v407 = vadd.f32 0.0, %v406
    %408 = vdwg.mxu0
    %409 = vmatpush.msra.mxu0 0.0
    %410 = vmatpush.msra.mxu0 0.0
    %411 = vmatpush.msra.mxu0 0.0
    %412 = vmatpush.msra.mxu0 0.0
    %413 = vmatpush.msra.mxu0 0.0
    %414 = vmatpush.msra.mxu0 0.0
    %415 = vmatpush.msra.mxu0 0.0
    %416 = vmatpush.msra.mxu0 0.0
    %v417 = vand.u32 %v363, 4294901760
    %v418 = vsub.f32 %v363, %v417
    %v419 = vand.u32 %v418, 4294901760
    %v420 = vsub.f32 %v418, %v419
    %v421 = vand.u32 %v420, 4294901760
    %422 = vmatpush.msra.mxu0 %v421
    %v423 = vand.u32 %v362, 4294901760
    %v424 = vsub.f32 %v362, %v423
    %v425 = vand.u32 %v424, 4294901760
    %v426 = vsub.f32 %v424, %v425
    %v427 = vand.u32 %v426, 4294901760
    %428 = vmatpush.msra.mxu0 %v427
    %v429 = vand.u32 %v361, 4294901760
    %v430 = vsub.f32 %v361, %v429
    %v431 = vand.u32 %v430, 4294901760
    %v432 = vsub.f32 %v430, %v431
    %v433 = vand.u32 %v432, 4294901760
    %434 = vmatpush.msra.mxu0 %v433
    %v435 = vand.u32 %v360, 4294901760
    %v436 = vsub.f32 %v360, %v435
    %v437 = vand.u32 %v436, 4294901760
    %v438 = vsub.f32 %v436, %v437
    %v439 = vand.u32 %v438, 4294901760
    %440 = vmatpush.msra.mxu0 %v439
    %v441 = vand.u32 %v359, 4294901760
    %v442 = vsub.f32 %v359, %v441
    %v443 = vand.u32 %v442, 4294901760
    %v444 = vsub.f32 %v442, %v443
    %v445 = vand.u32 %v444, 4294901760
    %446 = vmatpush.msra.mxu0 %v445
    %v447 = vand.u32 %v358, 4294901760
    %v448 = vsub.f32 %v358, %v447
    %v449 = vand.u32 %v448, 4294901760
    %v450 = vsub.f32 %v448, %v449
    %v451 = vand.u32 %v450, 4294901760
    %452 = vmatpush.msra.mxu0 %v451
    %v453 = vand.u32 %v357, 4294901760
    %v454 = vsub.f32 %v357, %v453
    %v455 = vand.u32 %v454, 4294901760
    %v456 = vsub.f32 %v454, %v455
    %v457 = vand.u32 %v456, 4294901760
    %458 = vmatpush.msra.mxu0 %v457
    %v459 = vand.u32 %v356, 4294901760
    %v460 = vsub.f32 %v356, %v459
    %v461 = vand.u32 %v460, 4294901760
    %v462 = vsub.f32 %v460, %v461
    %v463 = vand.u32 %v462, 4294901760
    %464 = vmatpush.msra.mxu0 %v463
    %v465 = vand.u32 %v374, 4294901760
    %466 = vmatmul.f32.gmra.mxu0 %v465
    %v467 = vpop.f32.mrf.mxu0
    %v468 = vadd.f32 %v407, %v467
    %469 = vdwg.mxu0
    %470 = vmatpush.msra.mxu0 0.0
    %471 = vmatpush.msra.mxu0 0.0
    %472 = vmatpush.msra.mxu0 0.0
    %473 = vmatpush.msra.mxu0 0.0
    %474 = vmatpush.msra.mxu0 0.0
    %475 = vmatpush.msra.mxu0 0.0
    %476 = vmatpush.msra.mxu0 0.0
    %477 = vmatpush.msra.mxu0 0.0
    %v478 = vand.u32 %v363, 4294901760
    %v479 = vsub.f32 %v363, %v478
    %480 = vmatpush.msra.mxu0 %v479
    %v481 = vand.u32 %v362, 4294901760
    %v482 = vsub.f32 %v362, %v481
    %483 = vmatpush.msra.mxu0 %v482
    %v484 = vand.u32 %v361, 4294901760
    %v485 = vsub.f32 %v361, %v484
    %486 = vmatpush.msra.mxu0 %v485
    %v487 = vand.u32 %v360, 4294901760
    %v488 = vsub.f32 %v360, %v487
    %489 = vmatpush.msra.mxu0 %v488
    %v490 = vand.u32 %v359, 4294901760
    %v491 = vsub.f32 %v359, %v490
    %492 = vmatpush.msra.mxu0 %v491
    %v493 = vand.u32 %v358, 4294901760
    %v494 = vsub.f32 %v358, %v493
    %495 = vmatpush.msra.mxu0 %v494
    %v496 = vand.u32 %v357, 4294901760
    %v497 = vsub.f32 %v357, %v496
    %498 = vmatpush.msra.mxu0 %v497
    %v499 = vand.u32 %v356, 4294901760
    %v500 = vsub.f32 %v356, %v499
    %501 = vmatpush.msra.mxu0 %v500
    %v502 = vand.u32 %v374, 4294901760
    %v503 = vsub.f32 %v374, %v502
    %504 = vmatmul.f32.gmra.mxu0 %v503
    %v505 = vpop.f32.mrf.mxu0
    %v506 = vadd.f32 %v468, %v505
    %507 = vdwg.mxu0
    %508 = vmatpush.msra.mxu0 0.0
    %509 = vmatpush.msra.mxu0 0.0
    %510 = vmatpush.msra.mxu0 0.0
    %511 = vmatpush.msra.mxu0 0.0
    %512 = vmatpush.msra.mxu0 0.0
    %513 = vmatpush.msra.mxu0 0.0
    %514 = vmatpush.msra.mxu0 0.0
    %515 = vmatpush.msra.mxu0 0.0
    %v516 = vand.u32 %v363, 4294901760
    %517 = vmatpush.msra.mxu0 %v516
    %v518 = vand.u32 %v362, 4294901760
    %519 = vmatpush.msra.mxu0 %v518
    %v520 = vand.u32 %v361, 4294901760
    %521 = vmatpush.msra.mxu0 %v520
    %v522 = vand.u32 %v360, 4294901760
    %523 = vmatpush.msra.mxu0 %v522
    %v524 = vand.u32 %v359, 4294901760
    %525 = vmatpush.msra.mxu0 %v524
    %v526 = vand.u32 %v358, 4294901760
    %527 = vmatpush.msra.mxu0 %v526
    %v528 = vand.u32 %v357, 4294901760
    %529 = vmatpush.msra.mxu0 %v528
    %v530 = vand.u32 %v356, 4294901760
    %531 = vmatpush.msra.mxu0 %v530
    %v532 = vand.u32 %v374, 4294901760
    %v533 = vsub.f32 %v374, %v532
    %v534 = vand.u32 %v533, 4294901760
    %535 = vmatmul.f32.gmra.mxu0 %v534
    %v536 = vpop.f32.mrf.mxu0
    %v537 = vadd.f32 %v506, %v536
    %538 = vdwg.mxu0
    %539 = vmatpush.msra.mxu0 0.0
    %540 = vmatpush.msra.mxu0 0.0
    %541 = vmatpush.msra.mxu0 0.0
    %542 = vmatpush.msra.mxu0 0.0
    %543 = vmatpush.msra.mxu0 0.0
    %544 = vmatpush.msra.mxu0 0.0
    %545 = vmatpush.msra.mxu0 0.0
    %546 = vmatpush.msra.mxu0 0.0
    %v547 = vand.u32 %v363, 4294901760
    %v548 = vsub.f32 %v363, %v547
    %v549 = vand.u32 %v548, 4294901760
    %550 = vmatpush.msra.mxu0 %v549
    %v551 = vand.u32 %v362, 4294901760
    %v552 = vsub.f32 %v362, %v551
    %v553 = vand.u32 %v552, 4294901760
    %554 = vmatpush.msra.mxu0 %v553
    %v555 = vand.u32 %v361, 4294901760
    %v556 = vsub.f32 %v361, %v555
    %v557 = vand.u32 %v556, 4294901760
    %558 = vmatpush.msra.mxu0 %v557
    %v559 = vand.u32 %v360, 4294901760
    %v560 = vsub.f32 %v360, %v559
    %v561 = vand.u32 %v560, 4294901760
    %562 = vmatpush.msra.mxu0 %v561
    %v563 = vand.u32 %v359, 4294901760
    %v564 = vsub.f32 %v359, %v563
    %v565 = vand.u32 %v564, 4294901760
    %566 = vmatpush.msra.mxu0 %v565
    %v567 = vand.u32 %v358, 4294901760
    %v568 = vsub.f32 %v358, %v567
    %v569 = vand.u32 %v568, 4294901760
    %570 = vmatpush.msra.mxu0 %v569
    %v571 = vand.u32 %v357, 4294901760
    %v572 = vsub.f32 %v357, %v571
    %v573 = vand.u32 %v572, 4294901760
    %574 = vmatpush.msra.mxu0 %v573
    %v575 = vand.u32 %v356, 4294901760
    %v576 = vsub.f32 %v356, %v575
    %v577 = vand.u32 %v576, 4294901760
    %578 = vmatpush.msra.mxu0 %v577
    %v579 = vand.u32 %v374, 4294901760
    %580 = vmatmul.f32.gmra.mxu0 %v579
    %v581 = vpop.f32.mrf.mxu0
    %v582 = vadd.f32 %v537, %v581
    %583 = vdwg.mxu0
    %584 = vmatpush.msra.mxu0 0.0
    %585 = vmatpush.msra.mxu0 0.0
    %586 = vmatpush.msra.mxu0 0.0
    %587 = vmatpush.msra.mxu0 0.0
    %588 = vmatpush.msra.mxu0 0.0
    %589 = vmatpush.msra.mxu0 0.0
    %590 = vmatpush.msra.mxu0 0.0
    %591 = vmatpush.msra.mxu0 0.0
    %v592 = vand.u32 %v363, 4294901760
    %593 = vmatpush.msra.mxu0 %v592
    %v594 = vand.u32 %v362, 4294901760
    %595 = vmatpush.msra.mxu0 %v594
    %v596 = vand.u32 %v361, 4294901760
    %597 = vmatpush.msra.mxu0 %v596
    %v598 = vand.u32 %v360, 4294901760
    %599 = vmatpush.msra.mxu0 %v598
    %v600 = vand.u32 %v359, 4294901760
    %601 = vmatpush.msra.mxu0 %v600
    %v602 = vand.u32 %v358, 4294901760
    %603 = vmatpush.msra.mxu0 %v602
    %v604 = vand.u32 %v357, 4294901760
    %605 = vmatpush.msra.mxu0 %v604
    %v606 = vand.u32 %v356, 4294901760
    %607 = vmatpush.msra.mxu0 %v606
    %v608 = vand.u32 %v374, 4294901760
    %609 = vmatmul.f32.gmra.mxu0 %v608
    %v610 = vpop.f32.mrf.mxu0
    %v611 = vadd.f32 %v582, %v610
    %612 = vdwg.mxu0
    %v617 = vsel %vm368, %v313, %v292
    %v618 = vsel %vm370, %v334, %v617
    %v619 = vsel %vm372, %v355, %v618
    %v620 = vsel %vm155, %v619, 0
    %622 = vmatpush.msra.mxu0 0.0
    %623 = vmatpush.msra.mxu0 0.0
    %624 = vmatpush.msra.mxu0 0.0
    %625 = vmatpush.msra.mxu0 0.0
    %626 = vmatpush.msra.mxu0 0.0
    %627 = vmatpush.msra.mxu0 0.0
    %628 = vmatpush.msra.mxu0 0.0
    %629 = vmatpush.msra.mxu0 0.0
    %v630 = vand.u32 %v363, 4294901760
    %631 = vmatpush.msra.mxu0 %v630
    %v632 = vand.u32 %v362, 4294901760
    %633 = vmatpush.msra.mxu0 %v632
    %v634 = vand.u32 %v361, 4294901760
    %635 = vmatpush.msra.mxu0 %v634
    %v636 = vand.u32 %v360, 4294901760
    %637 = vmatpush.msra.mxu0 %v636
    %v638 = vand.u32 %v359, 4294901760
    %639 = vmatpush.msra.mxu0 %v638
    %v640 = vand.u32 %v358, 4294901760
    %641 = vmatpush.msra.mxu0 %v640
    %v642 = vand.u32 %v357, 4294901760
    %643 = vmatpush.msra.mxu0 %v642
    %v644 = vand.u32 %v356, 4294901760
    %645 = vmatpush.msra.mxu0 %v644
    %v646 = vand.u32 %v620, 4294901760
    %v647 = vsub.f32 %v620, %v646
    %v648 = vand.u32 %v647, 4294901760
    %v649 = vsub.f32 %v647, %v648
    %v650 = vand.u32 %v649, 4294901760
    %651 = vmatmul.f32.gmra.mxu0 %v650
    %v652 = vpop.f32.mrf.mxu0
    %v653 = vadd.f32 0.0, %v652
    %654 = vdwg.mxu0
    %655 = vmatpush.msra.mxu0 0.0
    %656 = vmatpush.msra.mxu0 0.0
    %657 = vmatpush.msra.mxu0 0.0
    %658 = vmatpush.msra.mxu0 0.0
    %659 = vmatpush.msra.mxu0 0.0
    %660 = vmatpush.msra.mxu0 0.0
    %661 = vmatpush.msra.mxu0 0.0
    %662 = vmatpush.msra.mxu0 0.0
    %v663 = vand.u32 %v363, 4294901760
    %v664 = vsub.f32 %v363, %v663
    %v665 = vand.u32 %v664, 4294901760
    %v666 = vsub.f32 %v664, %v665
    %v667 = vand.u32 %v666, 4294901760
    %668 = vmatpush.msra.mxu0 %v667
    %v669 = vand.u32 %v362, 4294901760
    %v670 = vsub.f32 %v362, %v669
    %v671 = vand.u32 %v670, 4294901760
    %v672 = vsub.f32 %v670, %v671
    %v673 = vand.u32 %v672, 4294901760
    %674 = vmatpush.msra.mxu0 %v673
    %v675 = vand.u32 %v361, 4294901760
    %v676 = vsub.f32 %v361, %v675
    %v677 = vand.u32 %v676, 4294901760
    %v678 = vsub.f32 %v676, %v677
    %v679 = vand.u32 %v678, 4294901760
    %680 = vmatpush.msra.mxu0 %v679
    %v681 = vand.u32 %v360, 4294901760
    %v682 = vsub.f32 %v360, %v681
    %v683 = vand.u32 %v682, 4294901760
    %v684 = vsub.f32 %v682, %v683
    %v685 = vand.u32 %v684, 4294901760
    %686 = vmatpush.msra.mxu0 %v685
    %v687 = vand.u32 %v359, 4294901760
    %v688 = vsub.f32 %v359, %v687
    %v689 = vand.u32 %v688, 4294901760
    %v690 = vsub.f32 %v688, %v689
    %v691 = vand.u32 %v690, 4294901760
    %692 = vmatpush.msra.mxu0 %v691
    %v693 = vand.u32 %v358, 4294901760
    %v694 = vsub.f32 %v358, %v693
    %v695 = vand.u32 %v694, 4294901760
    %v696 = vsub.f32 %v694, %v695
    %v697 = vand.u32 %v696, 4294901760
    %698 = vmatpush.msra.mxu0 %v697
    %v699 = vand.u32 %v357, 4294901760
    %v700 = vsub.f32 %v357, %v699
    %v701 = vand.u32 %v700, 4294901760
    %v702 = vsub.f32 %v700, %v701
    %v703 = vand.u32 %v702, 4294901760
    %704 = vmatpush.msra.mxu0 %v703
    %v705 = vand.u32 %v356, 4294901760
    %v706 = vsub.f32 %v356, %v705
    %v707 = vand.u32 %v706, 4294901760
    %v708 = vsub.f32 %v706, %v707
    %v709 = vand.u32 %v708, 4294901760
    %710 = vmatpush.msra.mxu0 %v709
    %v711 = vand.u32 %v620, 4294901760
    %712 = vmatmul.f32.gmra.mxu0 %v711
    %v713 = vpop.f32.mrf.mxu0
    %v714 = vadd.f32 %v653, %v713
    %715 = vdwg.mxu0
    %716 = vmatpush.msra.mxu0 0.0
    %717 = vmatpush.msra.mxu0 0.0
    %718 = vmatpush.msra.mxu0 0.0
    %719 = vmatpush.msra.mxu0 0.0
    %720 = vmatpush.msra.mxu0 0.0
    %721 = vmatpush.msra.mxu0 0.0
    %722 = vmatpush.msra.mxu0 0.0
    %723 = vmatpush.msra.mxu0 0.0
    %v724 = vand.u32 %v363, 4294901760
    %v725 = vsub.f32 %v363, %v724
    %726 = vmatpush.msra.mxu0 %v725
    %v727 = vand.u32 %v362, 4294901760
    %v728 = vsub.f32 %v362, %v727
    %729 = vmatpush.msra.mxu0 %v728
    %v730 = vand.u32 %v361, 4294901760
    %v731 = vsub.f32 %v361, %v730
    %732 = vmatpush.msra.mxu0 %v731
    %v733 = vand.u32 %v360, 4294901760
    %v734 = vsub.f32 %v360, %v733
    %735 = vmatpush.msra.mxu0 %v734
    %v736 = vand.u32 %v359, 4294901760
    %v737 = vsub.f32 %v359, %v736
    %738 = vmatpush.msra.mxu0 %v737
    %v739 = vand.u32 %v358, 4294901760
    %v740 = vsub.f32 %v358, %v739
    %741 = vmatpush.msra.mxu0 %v740
    %v742 = vand.u32 %v357, 4294901760
    %v743 = vsub.f32 %v357, %v742
    %744 = vmatpush.msra.mxu0 %v743
    %v745 = vand.u32 %v356, 4294901760
    %v746 = vsub.f32 %v356, %v745
    %747 = vmatpush.msra.mxu0 %v746
    %v748 = vand.u32 %v620, 4294901760
    %v749 = vsub.f32 %v620, %v748
    %750 = vmatmul.f32.gmra.mxu0 %v749
    %v751 = vpop.f32.mrf.mxu0
    %v752 = vadd.f32 %v714, %v751
    %753 = vdwg.mxu0
    %754 = vmatpush.msra.mxu0 0.0
    %755 = vmatpush.msra.mxu0 0.0
    %756 = vmatpush.msra.mxu0 0.0
    %757 = vmatpush.msra.mxu0 0.0
    %758 = vmatpush.msra.mxu0 0.0
    %759 = vmatpush.msra.mxu0 0.0
    %760 = vmatpush.msra.mxu0 0.0
    %761 = vmatpush.msra.mxu0 0.0
    %v762 = vand.u32 %v363, 4294901760
    %763 = vmatpush.msra.mxu0 %v762
    %v764 = vand.u32 %v362, 4294901760
    %765 = vmatpush.msra.mxu0 %v764
    %v766 = vand.u32 %v361, 4294901760
    %767 = vmatpush.msra.mxu0 %v766
    %v768 = vand.u32 %v360, 4294901760
    %769 = vmatpush.msra.mxu0 %v768
    %v770 = vand.u32 %v359, 4294901760
    %771 = vmatpush.msra.mxu0 %v770
    %v772 = vand.u32 %v358, 4294901760
    %773 = vmatpush.msra.mxu0 %v772
    %v774 = vand.u32 %v357, 4294901760
    %775 = vmatpush.msra.mxu0 %v774
    %v776 = vand.u32 %v356, 4294901760
    %777 = vmatpush.msra.mxu0 %v776
    %v778 = vand.u32 %v620, 4294901760
    %v779 = vsub.f32 %v620, %v778
    %v780 = vand.u32 %v779, 4294901760
    %781 = vmatmul.f32.gmra.mxu0 %v780
    %v782 = vpop.f32.mrf.mxu0
    %v783 = vadd.f32 %v752, %v782
    %784 = vdwg.mxu0
    %785 = vmatpush.msra.mxu0 0.0
    %786 = vmatpush.msra.mxu0 0.0
    %787 = vmatpush.msra.mxu0 0.0
    %788 = vmatpush.msra.mxu0 0.0
    %789 = vmatpush.msra.mxu0 0.0
    %790 = vmatpush.msra.mxu0 0.0
    %791 = vmatpush.msra.mxu0 0.0
    %792 = vmatpush.msra.mxu0 0.0
    %v793 = vand.u32 %v363, 4294901760
    %v794 = vsub.f32 %v363, %v793
    %v795 = vand.u32 %v794, 4294901760
    %796 = vmatpush.msra.mxu0 %v795
    %v797 = vand.u32 %v362, 4294901760
    %v798 = vsub.f32 %v362, %v797
    %v799 = vand.u32 %v798, 4294901760
    %800 = vmatpush.msra.mxu0 %v799
    %v801 = vand.u32 %v361, 4294901760
    %v802 = vsub.f32 %v361, %v801
    %v803 = vand.u32 %v802, 4294901760
    %804 = vmatpush.msra.mxu0 %v803
    %v805 = vand.u32 %v360, 4294901760
    %v806 = vsub.f32 %v360, %v805
    %v807 = vand.u32 %v806, 4294901760
    %808 = vmatpush.msra.mxu0 %v807
    %v809 = vand.u32 %v359, 4294901760
    %v810 = vsub.f32 %v359, %v809
    %v811 = vand.u32 %v810, 4294901760
    %812 = vmatpush.msra.mxu0 %v811
    %v813 = vand.u32 %v358, 4294901760
    %v814 = vsub.f32 %v358, %v813
    %v815 = vand.u32 %v814, 4294901760
    %816 = vmatpush.msra.mxu0 %v815
    %v817 = vand.u32 %v357, 4294901760
    %v818 = vsub.f32 %v357, %v817
    %v819 = vand.u32 %v818, 4294901760
    %820 = vmatpush.msra.mxu0 %v819
    %v821 = vand.u32 %v356, 4294901760
    %v822 = vsub.f32 %v356, %v821
    %v823 = vand.u32 %v822, 4294901760
    %824 = vmatpush.msra.mxu0 %v823
    %v825 = vand.u32 %v620, 4294901760
    %826 = vmatmul.f32.gmra.mxu0 %v825
    %v827 = vpop.f32.mrf.mxu0
    %v828 = vadd.f32 %v783, %v827
    %829 = vdwg.mxu0
    %830 = vmatpush.msra.mxu0 0.0
    %831 = vmatpush.msra.mxu0 0.0
    %832 = vmatpush.msra.mxu0 0.0
    %833 = vmatpush.msra.mxu0 0.0
    %834 = vmatpush.msra.mxu0 0.0
    %835 = vmatpush.msra.mxu0 0.0
    %836 = vmatpush.msra.mxu0 0.0
    %837 = vmatpush.msra.mxu0 0.0
    %v838 = vand.u32 %v363, 4294901760
    %839 = vmatpush.msra.mxu0 %v838
    %v840 = vand.u32 %v362, 4294901760
    %841 = vmatpush.msra.mxu0 %v840
    %v842 = vand.u32 %v361, 4294901760
    %843 = vmatpush.msra.mxu0 %v842
    %v844 = vand.u32 %v360, 4294901760
    %845 = vmatpush.msra.mxu0 %v844
    %v846 = vand.u32 %v359, 4294901760
    %847 = vmatpush.msra.mxu0 %v846
    %v848 = vand.u32 %v358, 4294901760
    %849 = vmatpush.msra.mxu0 %v848
    %v850 = vand.u32 %v357, 4294901760
    %851 = vmatpush.msra.mxu0 %v850
    %v852 = vand.u32 %v356, 4294901760
    %853 = vmatpush.msra.mxu0 %v852
    %v854 = vand.u32 %v620, 4294901760
    %855 = vmatmul.f32.gmra.mxu0 %v854
    %v856 = vpop.f32.mrf.mxu0
    %v857 = vadd.f32 %v828, %v856
    %858 = vdwg.mxu0
    %v859 = vmul.f32 %v611, %v611
    %v860 = vsub.f32 %v857, %v859
    %v861 = vadd.f32 %v860, 1e-05
    %v862 = vrsqrt.pop %v861
    %v863 = vmul.f32 %v862, %v861
    %v864 = vmul.f32 %v863, %v862
    %v865 = vmul.f32 0.5, %v864
    %v866 = vsub.f32 1.5, %v865
    %v867 = vmul.f32 %v862, %v866
    %vm868 = vweird.f32 %v861
    %vm869 = vweird.f32 %v862
    %vm870 = vmor %vm868, %vm869
    %v871 = vsel %vm870, %v862, %v867
    %v872 = vld [vmem:[#allocation5] sm:$0xff]
    %v873 = vld [vmem:[#allocation5 + $0x8] sm:$0xff]
    %v874 = vld [vmem:[#allocation5 + $0x10] sm:$0xff]
    %v875 = vld [vmem:[#allocation5 + $0x18] sm:$0xff]
    %vm876 = vcmask 261120
    %v878 = vsel %vm876, %v611, 0
    %880 = vmatpush.msra.mxu0 0.0
    %881 = vmatpush.msra.mxu0 0.0
    %882 = vmatpush.msra.mxu0 0.0
    %883 = vmatpush.msra.mxu0 0.0
    %884 = vmatpush.msra.mxu0 0.0
    %885 = vmatpush.msra.mxu0 0.0
    %886 = vmatpush.msra.mxu0 0.0
    %887 = vmatpush.msra.mxu0 0.0
    %888 = vmatpush.msra.mxu0 0.0
    %889 = vmatpush.msra.mxu0 0.0
    %890 = vmatpush.msra.mxu0 0.0
    %891 = vmatpush.msra.mxu0 0.0
    %v892 = vand.u32 %v875, 4294901760
    %893 = vmatpush.msra.mxu0 %v892
    %v894 = vand.u32 %v874, 4294901760
    %895 = vmatpush.msra.mxu0 %v894
    %v896 = vand.u32 %v873, 4294901760
    %897 = vmatpush.msra.mxu0 %v896
    %v898 = vand.u32 %v872, 4294901760
    %899 = vmatpush.msra.mxu0 %v898
    %v900 = vand.u32 %v878, 4294901760
    %v901 = vsub.f32 %v878, %v900
    %v902 = vand.u32 %v901, 4294901760
    %v903 = vsub.f32 %v901, %v902
    %v904 = vand.u32 %v903, 4294901760
    %905 = vmatmul.f32.gmra.mxu0 %v904
    %v906 = vpop.f32.mrf.mxu0
    %v907 = vadd.f32 0.0, %v906
    %908 = vdwg.mxu0
    %909 = vmatpush.msra.mxu0 0.0
    %910 = vmatpush.msra.mxu0 0.0
    %911 = vmatpush.msra.mxu0 0.0
    %912 = vmatpush.msra.mxu0 0.0
    %913 = vmatpush.msra.mxu0 0.0
    %914 = vmatpush.msra.mxu0 0.0
    %915 = vmatpush.msra.mxu0 0.0
    %916 = vmatpush.msra.mxu0 0.0
    %917 = vmatpush.msra.mxu0 0.0
    %918 = vmatpush.msra.mxu0 0.0
    %919 = vmatpush.msra.mxu0 0.0
    %920 = vmatpush.msra.mxu0 0.0
    %v921 = vand.u32 %v875, 4294901760
    %v922 = vsub.f32 %v875, %v921
    %v923 = vand.u32 %v922, 4294901760
    %v924 = vsub.f32 %v922, %v923
    %v925 = vand.u32 %v924, 4294901760
    %926 = vmatpush.msra.mxu0 %v925
    %v927 = vand.u32 %v874, 4294901760
    %v928 = vsub.f32 %v874, %v927
    %v929 = vand.u32 %v928, 4294901760
    %v930 = vsub.f32 %v928, %v929
    %v931 = vand.u32 %v930, 4294901760
    %932 = vmatpush.msra.mxu0 %v931
    %v933 = vand.u32 %v873, 4294901760
    %v934 = vsub.f32 %v873, %v933
    %v935 = vand.u32 %v934, 4294901760
    %v936 = vsub.f32 %v934, %v935
    %v937 = vand.u32 %v936, 4294901760
    %938 = vmatpush.msra.mxu0 %v937
    %v939 = vand.u32 %v872, 4294901760
    %v940 = vsub.f32 %v872, %v939
    %v941 = vand.u32 %v940, 4294901760
    %v942 = vsub.f32 %v940, %v941
    %v943 = vand.u32 %v942, 4294901760
    %944 = vmatpush.msra.mxu0 %v943
    %v945 = vand.u32 %v878, 4294901760
    %946 = vmatmul.f32.gmra.mxu0 %v945
    %v947 = vpop.f32.mrf.mxu0
    %v948 = vadd.f32 %v907, %v947
    %949 = vdwg.mxu0
    %950 = vmatpush.msra.mxu0 0.0
    %951 = vmatpush.msra.mxu0 0.0
    %952 = vmatpush.msra.mxu0 0.0
    %953 = vmatpush.msra.mxu0 0.0
    %954 = vmatpush.msra.mxu0 0.0
    %955 = vmatpush.msra.mxu0 0.0
    %956 = vmatpush.msra.mxu0 0.0
    %957 = vmatpush.msra.mxu0 0.0
    %958 = vmatpush.msra.mxu0 0.0
    %959 = vmatpush.msra.mxu0 0.0
    %960 = vmatpush.msra.mxu0 0.0
    %961 = vmatpush.msra.mxu0 0.0
    %v962 = vand.u32 %v875, 4294901760
    %v963 = vsub.f32 %v875, %v962
    %964 = vmatpush.msra.mxu0 %v963
    %v965 = vand.u32 %v874, 4294901760
    %v966 = vsub.f32 %v874, %v965
    %967 = vmatpush.msra.mxu0 %v966
    %v968 = vand.u32 %v873, 4294901760
    %v969 = vsub.f32 %v873, %v968
    %970 = vmatpush.msra.mxu0 %v969
    %v971 = vand.u32 %v872, 4294901760
    %v972 = vsub.f32 %v872, %v971
    %973 = vmatpush.msra.mxu0 %v972
    %v974 = vand.u32 %v878, 4294901760
    %v975 = vsub.f32 %v878, %v974
    %976 = vmatmul.f32.gmra.mxu0 %v975
    %v977 = vpop.f32.mrf.mxu0
    %v978 = vadd.f32 %v948, %v977
    %979 = vdwg.mxu0
    %980 = vmatpush.msra.mxu0 0.0
    %981 = vmatpush.msra.mxu0 0.0
    %982 = vmatpush.msra.mxu0 0.0
    %983 = vmatpush.msra.mxu0 0.0
    %984 = vmatpush.msra.mxu0 0.0
    %985 = vmatpush.msra.mxu0 0.0
    %986 = vmatpush.msra.mxu0 0.0
    %987 = vmatpush.msra.mxu0 0.0
    %988 = vmatpush.msra.mxu0 0.0
    %989 = vmatpush.msra.mxu0 0.0
    %990 = vmatpush.msra.mxu0 0.0
    %991 = vmatpush.msra.mxu0 0.0
    %v992 = vand.u32 %v875, 4294901760
    %993 = vmatpush.msra.mxu0 %v992
    %v994 = vand.u32 %v874, 4294901760
    %995 = vmatpush.msra.mxu0 %v994
    %v996 = vand.u32 %v873, 4294901760
    %997 = vmatpush.msra.mxu0 %v996
    %v998 = vand.u32 %v872, 4294901760
    %999 = vmatpush.msra.mxu0 %v998
    %v1000 = vand.u32 %v878, 4294901760
    %v1001 = vsub.f32 %v878, %v1000
    %v1002 = vand.u32 %v1001, 4294901760
    %1003 = vmatmul.f32.gmra.mxu0 %v1002
    %v1004 = vpop.f32.mrf.mxu0
    %v1005 = vadd.f32 %v978, %v1004
    %1006 = vdwg.mxu0
    %1007 = vmatpush.msra.mxu0 0.0
    %1008 = vmatpush.msra.mxu0 0.0
    %1009 = vmatpush.msra.mxu0 0.0
    %1010 = vmatpush.msra.mxu0 0.0
    %1011 = vmatpush.msra.mxu0 0.0
    %1012 = vmatpush.msra.mxu0 0.0
    %1013 = vmatpush.msra.mxu0 0.0
    %1014 = vmatpush.msra.mxu0 0.0
    %1015 = vmatpush.msra.mxu0 0.0
    %1016 = vmatpush.msra.mxu0 0.0
    %1017 = vmatpush.msra.mxu0 0.0
    %1018 = vmatpush.msra.mxu0 0.0
    %v1019 = vand.u32 %v875, 4294901760
    %v1020 = vsub.f32 %v875, %v1019
    %v1021 = vand.u32 %v1020, 4294901760
    %1022 = vmatpush.msra.mxu0 %v1021
    %v1023 = vand.u32 %v874, 4294901760
    %v1024 = vsub.f32 %v874, %v1023
    %v1025 = vand.u32 %v1024, 4294901760
    %1026 = vmatpush.msra.mxu0 %v1025
    %v1027 = vand.u32 %v873, 4294901760
    %v1028 = vsub.f32 %v873, %v1027
    %v1029 = vand.u32 %v1028, 4294901760
    %1030 = vmatpush.msra.mxu0 %v1029
    %v1031 = vand.u32 %v872, 4294901760
    %v1032 = vsub.f32 %v872, %v1031
    %v1033 = vand.u32 %v1032, 4294901760
    %1034 = vmatpush.msra.mxu0 %v1033
    %v1035 = vand.u32 %v878, 4294901760
    %1036 = vmatmul.f32.gmra.mxu0 %v1035
    %v1037 = vpop.f32.mrf.mxu0
    %v1038 = vadd.f32 %v1005, %v1037
    %1039 = vdwg.mxu0
    %1040 = vmatpush.msra.mxu0 0.0
    %1041 = vmatpush.msra.mxu0 0.0
    %1042 = vmatpush.msra.mxu0 0.0
    %1043 = vmatpush.msra.mxu0 0.0
    %1044 = vmatpush.msra.mxu0 0.0
    %1045 = vmatpush.msra.mxu0 0.0
    %1046 = vmatpush.msra.mxu0 0.0
    %1047 = vmatpush.msra.mxu0 0.0
    %1048 = vmatpush.msra.mxu0 0.0
    %1049 = vmatpush.msra.mxu0 0.0
    %1050 = vmatpush.msra.mxu0 0.0
    %1051 = vmatpush.msra.mxu0 0.0
    %v1052 = vand.u32 %v875, 4294901760
    %1053 = vmatpush.msra.mxu0 %v1052
    %v1054 = vand.u32 %v874, 4294901760
    %1055 = vmatpush.msra.mxu0 %v1054
    %v1056 = vand.u32 %v873, 4294901760
    %1057 = vmatpush.msra.mxu0 %v1056
    %v1058 = vand.u32 %v872, 4294901760
    %1059 = vmatpush.msra.mxu0 %v1058
    %v1060 = vand.u32 %v878, 4294901760
    %1061 = vmatmul.f32.gmra.mxu0 %v1060
    %v1062 = vpop.f32.mrf.mxu0
    %v1063 = vadd.f32 %v1038, %v1062
    %1064 = vdwg.mxu0
    %v1066 = vsel %vm876, %v871, 0
    %1068 = vmatpush.msra.mxu0 0.0
    %1069 = vmatpush.msra.mxu0 0.0
    %1070 = vmatpush.msra.mxu0 0.0
    %1071 = vmatpush.msra.mxu0 0.0
    %1072 = vmatpush.msra.mxu0 0.0
    %1073 = vmatpush.msra.mxu0 0.0
    %1074 = vmatpush.msra.mxu0 0.0
    %1075 = vmatpush.msra.mxu0 0.0
    %1076 = vmatpush.msra.mxu0 0.0
    %1077 = vmatpush.msra.mxu0 0.0
    %1078 = vmatpush.msra.mxu0 0.0
    %1079 = vmatpush.msra.mxu0 0.0
    %v1080 = vand.u32 %v875, 4294901760
    %1081 = vmatpush.msra.mxu0 %v1080
    %v1082 = vand.u32 %v874, 4294901760
    %1083 = vmatpush.msra.mxu0 %v1082
    %v1084 = vand.u32 %v873, 4294901760
    %1085 = vmatpush.msra.mxu0 %v1084
    %v1086 = vand.u32 %v872, 4294901760
    %1087 = vmatpush.msra.mxu0 %v1086
    %v1088 = vand.u32 %v1066, 4294901760
    %v1089 = vsub.f32 %v1066, %v1088
    %v1090 = vand.u32 %v1089, 4294901760
    %v1091 = vsub.f32 %v1089, %v1090
    %v1092 = vand.u32 %v1091, 4294901760
    %1093 = vmatmul.f32.gmra.mxu0 %v1092
    %v1094 = vpop.f32.mrf.mxu0
    %v1095 = vadd.f32 0.0, %v1094
    %1096 = vdwg.mxu0
    %1097 = vmatpush.msra.mxu0 0.0
    %1098 = vmatpush.msra.mxu0 0.0
    %1099 = vmatpush.msra.mxu0 0.0
    %1100 = vmatpush.msra.mxu0 0.0
    %1101 = vmatpush.msra.mxu0 0.0
    %1102 = vmatpush.msra.mxu0 0.0
    %1103 = vmatpush.msra.mxu0 0.0
    %1104 = vmatpush.msra.mxu0 0.0
    %1105 = vmatpush.msra.mxu0 0.0
    %1106 = vmatpush.msra.mxu0 0.0
    %1107 = vmatpush.msra.mxu0 0.0
    %1108 = vmatpush.msra.mxu0 0.0
    %v1109 = vand.u32 %v875, 4294901760
    %v1110 = vsub.f32 %v875, %v1109
    %v1111 = vand.u32 %v1110, 4294901760
    %v1112 = vsub.f32 %v1110, %v1111
    %v1113 = vand.u32 %v1112, 4294901760
    %1114 = vmatpush.msra.mxu0 %v1113
    %v1115 = vand.u32 %v874, 4294901760
    %v1116 = vsub.f32 %v874, %v1115
    %v1117 = vand.u32 %v1116, 4294901760
    %v1118 = vsub.f32 %v1116, %v1117
    %v1119 = vand.u32 %v1118, 4294901760
    %1120 = vmatpush.msra.mxu0 %v1119
    %v1121 = vand.u32 %v873, 4294901760
    %v1122 = vsub.f32 %v873, %v1121
    %v1123 = vand.u32 %v1122, 4294901760
    %v1124 = vsub.f32 %v1122, %v1123
    %v1125 = vand.u32 %v1124, 4294901760
    %1126 = vmatpush.msra.mxu0 %v1125
    %v1127 = vand.u32 %v872, 4294901760
    %v1128 = vsub.f32 %v872, %v1127
    %v1129 = vand.u32 %v1128, 4294901760
    %v1130 = vsub.f32 %v1128, %v1129
    %v1131 = vand.u32 %v1130, 4294901760
    %1132 = vmatpush.msra.mxu0 %v1131
    %v1133 = vand.u32 %v1066, 4294901760
    %1134 = vmatmul.f32.gmra.mxu0 %v1133
    %v1135 = vpop.f32.mrf.mxu0
    %v1136 = vadd.f32 %v1095, %v1135
    %1137 = vdwg.mxu0
    %1138 = vmatpush.msra.mxu0 0.0
    %1139 = vmatpush.msra.mxu0 0.0
    %1140 = vmatpush.msra.mxu0 0.0
    %1141 = vmatpush.msra.mxu0 0.0
    %1142 = vmatpush.msra.mxu0 0.0
    %1143 = vmatpush.msra.mxu0 0.0
    %1144 = vmatpush.msra.mxu0 0.0
    %1145 = vmatpush.msra.mxu0 0.0
    %1146 = vmatpush.msra.mxu0 0.0
    %1147 = vmatpush.msra.mxu0 0.0
    %1148 = vmatpush.msra.mxu0 0.0
    %1149 = vmatpush.msra.mxu0 0.0
    %v1150 = vand.u32 %v875, 4294901760
    %v1151 = vsub.f32 %v875, %v1150
    %1152 = vmatpush.msra.mxu0 %v1151
    %v1153 = vand.u32 %v874, 4294901760
    %v1154 = vsub.f32 %v874, %v1153
    %1155 = vmatpush.msra.mxu0 %v1154
    %v1156 = vand.u32 %v873, 4294901760
    %v1157 = vsub.f32 %v873, %v1156
    %1158 = vmatpush.msra.mxu0 %v1157
    %v1159 = vand.u32 %v872, 4294901760
    %v1160 = vsub.f32 %v872, %v1159
    %1161 = vmatpush.msra.mxu0 %v1160
    %v1162 = vand.u32 %v1066, 4294901760
    %v1163 = vsub.f32 %v1066, %v1162
    %1164 = vmatmul.f32.gmra.mxu0 %v1163
    %v1165 = vpop.f32.mrf.mxu0
    %v1166 = vadd.f32 %v1136, %v1165
    %1167 = vdwg.mxu0
    %1168 = vmatpush.msra.mxu0 0.0
    %1169 = vmatpush.msra.mxu0 0.0
    %1170 = vmatpush.msra.mxu0 0.0
    %1171 = vmatpush.msra.mxu0 0.0
    %1172 = vmatpush.msra.mxu0 0.0
    %1173 = vmatpush.msra.mxu0 0.0
    %1174 = vmatpush.msra.mxu0 0.0
    %1175 = vmatpush.msra.mxu0 0.0
    %1176 = vmatpush.msra.mxu0 0.0
    %1177 = vmatpush.msra.mxu0 0.0
    %1178 = vmatpush.msra.mxu0 0.0
    %1179 = vmatpush.msra.mxu0 0.0
    %v1180 = vand.u32 %v875, 4294901760
    %1181 = vmatpush.msra.mxu0 %v1180
    %v1182 = vand.u32 %v874, 4294901760
    %1183 = vmatpush.msra.mxu0 %v1182
    %v1184 = vand.u32 %v873, 4294901760
    %1185 = vmatpush.msra.mxu0 %v1184
    %v1186 = vand.u32 %v872, 4294901760
    %1187 = vmatpush.msra.mxu0 %v1186
    %v1188 = vand.u32 %v1066, 4294901760
    %v1189 = vsub.f32 %v1066, %v1188
    %v1190 = vand.u32 %v1189, 4294901760
    %1191 = vmatmul.f32.gmra.mxu0 %v1190
    %v1192 = vpop.f32.mrf.mxu0
    %v1193 = vadd.f32 %v1166, %v1192
    %1194 = vdwg.mxu0
    %1195 = vmatpush.msra.mxu0 0.0
    %1196 = vmatpush.msra.mxu0 0.0
    %1197 = vmatpush.msra.mxu0 0.0
    %1198 = vmatpush.msra.mxu0 0.0
    %1199 = vmatpush.msra.mxu0 0.0
    %1200 = vmatpush.msra.mxu0 0.0
    %1201 = vmatpush.msra.mxu0 0.0
    %1202 = vmatpush.msra.mxu0 0.0
    %1203 = vmatpush.msra.mxu0 0.0
    %1204 = vmatpush.msra.mxu0 0.0
    %1205 = vmatpush.msra.mxu0 0.0
    %1206 = vmatpush.msra.mxu0 0.0
    %v1207 = vand.u32 %v875, 4294901760
    %v1208 = vsub.f32 %v875, %v1207
    %v1209 = vand.u32 %v1208, 4294901760
    %1210 = vmatpush.msra.mxu0 %v1209
    %v1211 = vand.u32 %v874, 4294901760
    %v1212 = vsub.f32 %v874, %v1211
    %v1213 = vand.u32 %v1212, 4294901760
    %1214 = vmatpush.msra.mxu0 %v1213
    %v1215 = vand.u32 %v873, 4294901760
    %v1216 = vsub.f32 %v873, %v1215
    %v1217 = vand.u32 %v1216, 4294901760
    %1218 = vmatpush.msra.mxu0 %v1217
    %v1219 = vand.u32 %v872, 4294901760
    %v1220 = vsub.f32 %v872, %v1219
    %v1221 = vand.u32 %v1220, 4294901760
    %1222 = vmatpush.msra.mxu0 %v1221
    %v1223 = vand.u32 %v1066, 4294901760
    %1224 = vmatmul.f32.gmra.mxu0 %v1223
    %v1225 = vpop.f32.mrf.mxu0
    %v1226 = vadd.f32 %v1193, %v1225
    %1227 = vdwg.mxu0
    %1228 = vmatpush.msra.mxu0 0.0
    %1229 = vmatpush.msra.mxu0 0.0
    %1230 = vmatpush.msra.mxu0 0.0
    %1231 = vmatpush.msra.mxu0 0.0
    %1232 = vmatpush.msra.mxu0 0.0
    %1233 = vmatpush.msra.mxu0 0.0
    %1234 = vmatpush.msra.mxu0 0.0
    %1235 = vmatpush.msra.mxu0 0.0
    %1236 = vmatpush.msra.mxu0 0.0
    %1237 = vmatpush.msra.mxu0 0.0
    %1238 = vmatpush.msra.mxu0 0.0
    %1239 = vmatpush.msra.mxu0 0.0
    %v1240 = vand.u32 %v875, 4294901760
    %1241 = vmatpush.msra.mxu0 %v1240
    %v1242 = vand.u32 %v874, 4294901760
    %1243 = vmatpush.msra.mxu0 %v1242
    %v1244 = vand.u32 %v873, 4294901760
    %1245 = vmatpush.msra.mxu0 %v1244
    %v1246 = vand.u32 %v872, 4294901760
    %1247 = vmatpush.msra.mxu0 %v1246
    %v1248 = vand.u32 %v1066, 4294901760
    %1249 = vmatmul.f32.gmra.mxu0 %v1248
    %v1250 = vpop.f32.mrf.mxu0
    %v1251 = vadd.f32 %v1226, %v1250
    %1252 = vdwg.mxu0
    %v1254 = vrot.slane %v1063, 1
    %v1255 = vrot.slane %v1063, 2
    %v1256 = vrot.slane %v1063, 3
    %v1257 = vperm.slane %v1063, 0
    %v1258 = vperm.slane %v1254, 0
    %v1259 = vperm.slane %v1255, 0
    %v1260 = vperm.slane %v1256, 0
    %v1265 = vsub.f32 %v75, %v1257
    %v1266 = vsub.f32 %v76, %v1257
    %v1267 = vsub.f32 %v77, %v1257
    %v1268 = vsub.f32 %v78, %v1257
    %v1269 = vsub.f32 %v108, %v1257
    %v1270 = vsub.f32 %v110, %v1257
    %v1271 = vsub.f32 %v112, %v1257
    %v1272 = vsub.f32 %v114, %v1257
    %v1273 = vsub.f32 %v79, %v1258
    %v1274 = vsub.f32 %v80, %v1258
    %v1275 = vsub.f32 %v81, %v1258
    %v1276 = vsub.f32 %v82, %v1258
    %v1277 = vsub.f32 %v116, %v1258
    %v1278 = vsub.f32 %v118, %v1258
    %v1279 = vsub.f32 %v120, %v1258
    %v1280 = vsub.f32 %v122, %v1258
    %v1281 = vsub.f32 %v83, %v1259
    %v1282 = vsub.f32 %v84, %v1259
    %v1283 = vsub.f32 %v85, %v1259
    %v1284 = vsub.f32 %v86, %v1259
    %v1285 = vsub.f32 %v124, %v1259
    %v1286 = vsub.f32 %v126, %v1259
    %v1287 = vsub.f32 %v128, %v1259
    %v1288 = vsub.f32 %v130, %v1259
    %v1289 = vsub.f32 %v87, %v1260
    %v1290 = vsub.f32 %v88, %v1260
    %v1291 = vsub.f32 %v89, %v1260
    %v1292 = vsub.f32 %v90, %v1260
    %v1293 = vsub.f32 %v132, %v1260
    %v1294 = vsub.f32 %v134, %v1260
    %v1295 = vsub.f32 %v136, %v1260
    %v1296 = vsub.f32 %v138, %v1260
    %v1298 = vrot.slane %v1251, 1
    %v1299 = vrot.slane %v1251, 2
    %v1300 = vrot.slane %v1251, 3
    %v1301 = vperm.slane %v1251, 0
    %v1302 = vperm.slane %v1298, 0
    %v1303 = vperm.slane %v1299, 0
    %v1304 = vperm.slane %v1300, 0
    %v1309 = vmul.f32 %v1265, %v1301
    %v1310 = vmul.f32 %v1266, %v1301
    %v1311 = vmul.f32 %v1267, %v1301
    %v1312 = vmul.f32 %v1268, %v1301
    %v1313 = vmul.f32 %v1269, %v1301
    %v1314 = vmul.f32 %v1270, %v1301
    %v1315 = vmul.f32 %v1271, %v1301
    %v1316 = vmul.f32 %v1272, %v1301
    %v1317 = vmul.f32 %v1273, %v1302
    %v1318 = vmul.f32 %v1274, %v1302
    %v1319 = vmul.f32 %v1275, %v1302
    %v1320 = vmul.f32 %v1276, %v1302
    %v1321 = vmul.f32 %v1277, %v1302
    %v1322 = vmul.f32 %v1278, %v1302
    %v1323 = vmul.f32 %v1279, %v1302
    %v1324 = vmul.f32 %v1280, %v1302
    %v1325 = vmul.f32 %v1281, %v1303
    %v1326 = vmul.f32 %v1282, %v1303
    %v1327 = vmul.f32 %v1283, %v1303
    %v1328 = vmul.f32 %v1284, %v1303
    %v1329 = vmul.f32 %v1285, %v1303
    %v1330 = vmul.f32 %v1286, %v1303
    %v1331 = vmul.f32 %v1287, %v1303
    %v1332 = vmul.f32 %v1288, %v1303
    %v1333 = vmul.f32 %v1289, %v1304
    %v1334 = vmul.f32 %v1290, %v1304
    %v1335 = vmul.f32 %v1291, %v1304
    %v1336 = vmul.f32 %v1292, %v1304
    %v1337 = vmul.f32 %v1293, %v1304
    %v1338 = vmul.f32 %v1294, %v1304
    %v1339 = vmul.f32 %v1295, %v1304
    %v1340 = vmul.f32 %v1296, %v1304
    %v1341 = vpack.c.bf16 %v1310, %v1309
    %v1342 = vpack.c.bf16 %v1312, %v1311
    %v1343 = vpack.c.bf16 %v1314, %v1313
    %v1344 = vpack.c.bf16 %v1316, %v1315
    %v1345 = vpack.c.bf16 %v1318, %v1317
    %v1346 = vpack.c.bf16 %v1320, %v1319
    %v1347 = vpack.c.bf16 %v1322, %v1321
    %v1348 = vpack.c.bf16 %v1324, %v1323
    %v1349 = vpack.c.bf16 %v1326, %v1325
    %v1350 = vpack.c.bf16 %v1328, %v1327
    %v1351 = vpack.c.bf16 %v1330, %v1329
    %v1352 = vpack.c.bf16 %v1332, %v1331
    %v1353 = vpack.c.bf16 %v1334, %v1333
    %v1354 = vpack.c.bf16 %v1336, %v1335
    %v1355 = vpack.c.bf16 %v1338, %v1337
    %v1356 = vpack.c.bf16 %v1340, %v1339
    %v1357 = vld [vmem:[%s3] sm:$0xf]
    %v1358 = vld [vmem:[%s3 + $0x4] sm:$0xf]
    %v1359 = vld [vmem:[%s3 + $0x8] sm:$0xf]
    %v1360 = vld [vmem:[%s3 + $0xc] sm:$0xf]
    %v1361 = vld [vmem:[%s3 + $0x10] sm:$0xf]
    %v1362 = vld [vmem:[%s3 + $0x14] sm:$0xf]
    %v1363 = vld [vmem:[%s3 + $0x18] sm:$0xf]
    %v1364 = vld [vmem:[%s3 + $0x1c] sm:$0xf]
    %v1365 = vld [vmem:[%s4] sm:$0x1]
    %v1367 = vperm.slane %v1365, 0
    %v1377 = vunpack.c.l.b16 %v1357
    %v1378 = vunpack.c.l.b16 %v1358
    %v1379 = vunpack.c.l.b16 %v1359
    %v1380 = vunpack.c.l.b16 %v1360
    %v1381 = vunpack.c.l.b16 %v1361
    %v1382 = vunpack.c.l.b16 %v1362
    %v1383 = vunpack.c.l.b16 %v1363
    %v1384 = vunpack.c.l.b16 %v1364
    %v1385 = vpack.c.b16 %v1378, %v1377
    %v1386 = vpack.c.b16 %v1380, %v1379
    %v1387 = vpack.c.b16 %v1382, %v1381
    %v1388 = vpack.c.b16 %v1384, %v1383
    %v1394 = vsel %vm155, %v1341, 0
    %v1397 = vsel %vm155, %v1342, 0
    %v1400 = vsel %vm155, %v1343, 0
    %v1403 = vsel %vm155, %v1344, 0
    %v1406 = vsel %vm155, %v1345, 0
    %v1409 = vsel %vm155, %v1346, 0
    %v1412 = vsel %vm155, %v1347, 0
    %v1415 = vsel %vm155, %v1348, 0
    %v1418 = vsel %vm155, %v1349, 0
    %v1421 = vsel %vm155, %v1350, 0
    %v1424 = vsel %vm155, %v1351, 0
    %v1427 = vsel %vm155, %v1352, 0
    %v1430 = vsel %vm155, %v1353, 0
    %v1433 = vsel %vm155, %v1354, 0
    %v1436 = vsel %vm155, %v1355, 0
    %v1439 = vsel %vm155, %v1356, 0
    %1441 = vmatpush.bf16.msra.mxu0 0
    %1442 = vmatpush.bf16.msra.mxu0 0
    %1443 = vmatpush.bf16.msra.mxu0 0
    %1444 = vmatpush.bf16.msra.mxu0 0
    %1445 = vmatpush.bf16.msra.mxu0 %v1388
    %1446 = vmatpush.bf16.msra.mxu0 %v1387
    %1447 = vmatpush.bf16.msra.mxu0 %v1386
    %1448 = vmatpush.bf16.msra.mxu0 %v1385
    %1449 = vmatmul.bf16.gmra.mxu0 %v1394
    %v1450 = vpop.f32.mrf.mxu0
    %v1451 = vadd.f32 %v1367, %v1450
    %v1452 = vpop.f32.mrf.mxu0
    %v1453 = vadd.f32 %v1367, %v1452
    %1454 = vmatmul.bf16.gmra.mxu0 %v1397
    %v1455 = vpop.f32.mrf.mxu0
    %v1456 = vadd.f32 %v1367, %v1455
    %v1457 = vpop.f32.mrf.mxu0
    %v1458 = vadd.f32 %v1367, %v1457
    %1459 = vmatmul.bf16.gmra.mxu0 %v1400
    %v1460 = vpop.f32.mrf.mxu0
    %v1461 = vadd.f32 %v1367, %v1460
    %v1462 = vpop.f32.mrf.mxu0
    %v1463 = vadd.f32 %v1367, %v1462
    %1464 = vmatmul.bf16.gmra.mxu0 %v1403
    %v1465 = vpop.f32.mrf.mxu0
    %v1466 = vadd.f32 %v1367, %v1465
    %v1467 = vpop.f32.mrf.mxu0
    %v1468 = vadd.f32 %v1367, %v1467
    %1469 = vmatmul.bf16.gmra.mxu0 %v1406
    %v1470 = vpop.f32.mrf.mxu0
    %v1471 = vadd.f32 %v1367, %v1470
    %v1472 = vpop.f32.mrf.mxu0
    %v1473 = vadd.f32 %v1367, %v1472
    %1474 = vmatmul.bf16.gmra.mxu0 %v1409
    %v1475 = vpop.f32.mrf.mxu0
    %v1476 = vadd.f32 %v1367, %v1475
    %v1477 = vpop.f32.mrf.mxu0
    %v1478 = vadd.f32 %v1367, %v1477
    %1479 = vmatmul.bf16.gmra.mxu0 %v1412
    %v1480 = vpop.f32.mrf.mxu0
    %v1481 = vadd.f32 %v1367, %v1480
    %v1482 = vpop.f32.mrf.mxu0
    %v1483 = vadd.f32 %v1367, %v1482
    %1484 = vmatmul.bf16.gmra.mxu0 %v1415
    %v1485 = vpop.f32.mrf.mxu0
    %v1486 = vadd.f32 %v1367, %v1485
    %v1487 = vpop.f32.mrf.mxu0
    %v1488 = vadd.f32 %v1367, %v1487
    %1489 = vmatmul.bf16.gmra.mxu0 %v1418
    %v1490 = vpop.f32.mrf.mxu0
    %v1491 = vadd.f32 %v1367, %v1490
    %v1492 = vpop.f32.mrf.mxu0
    %v1493 = vadd.f32 %v1367, %v1492
    %1494 = vmatmul.bf16.gmra.mxu0 %v1421
    %v1495 = vpop.f32.mrf.mxu0
    %v1496 = vadd.f32 %v1367, %v1495
    %v1497 = vpop.f32.mrf.mxu0
    %v1498 = vadd.f32 %v1367, %v1497
    %1499 = vmatmul.bf16.gmra.mxu0 %v1424
    %v1500 = vpop.f32.mrf.mxu0
    %v1501 = vadd.f32 %v1367, %v1500
    %v1502 = vpop.f32.mrf.mxu0
    %v1503 = vadd.f32 %v1367, %v1502
    %1504 = vmatmul.bf16.gmra.mxu0 %v1427
    %v1505 = vpop.f32.mrf.mxu0
    %v1506 = vadd.f32 %v1367, %v1505
    %v1507 = vpop.f32.mrf.mxu0
    %v1508 = vadd.f32 %v1367, %v1507
    %1509 = vmatmul.bf16.gmra.mxu0 %v1430
    %v1510 = vpop.f32.mrf.mxu0
    %v1511 = vadd.f32 %v1367, %v1510
    %v1512 = vpop.f32.mrf.mxu0
    %v1513 = vadd.f32 %v1367, %v1512
    %1514 = vmatmul.bf16.gmra.mxu0 %v1433
    %v1515 = vpop.f32.mrf.mxu0
    %v1516 = vadd.f32 %v1367, %v1515
    %v1517 = vpop.f32.mrf.mxu0
    %v1518 = vadd.f32 %v1367, %v1517
    %1519 = vmatmul.bf16.gmra.mxu0 %v1436
    %v1520 = vpop.f32.mrf.mxu0
    %v1521 = vadd.f32 %v1367, %v1520
    %v1522 = vpop.f32.mrf.mxu0
    %v1523 = vadd.f32 %v1367, %v1522
    %1524 = vmatmul.bf16.gmra.mxu0 %v1439
    %v1525 = vpop.f32.mrf.mxu0
    %v1526 = vadd.f32 %v1367, %v1525
    %v1527 = vpop.f32.mrf.mxu0
    %v1528 = vadd.f32 %v1367, %v1527
    %1529 = vdwg.mxu0
    %s1530 = scalar_lea.vmem %s3, 32
    %v1531 = vld [vmem:[%s1530] sm:$0xf]
    %v1532 = vld [vmem:[%s1530 + $0x4] sm:$0xf]
    %v1533 = vld [vmem:[%s1530 + $0x8] sm:$0xf]
    %v1534 = vld [vmem:[%s1530 + $0xc] sm:$0xf]
    %v1535 = vld [vmem:[%s1530 + $0x10] sm:$0xf]
    %v1536 = vld [vmem:[%s1530 + $0x14] sm:$0xf]
    %v1537 = vld [vmem:[%s1530 + $0x18] sm:$0xf]
    %v1538 = vld [vmem:[%s1530 + $0x1c] sm:$0xf]
    %s1539 = scalar_lea.vmem %s4, 1
    %v1540 = vld [vmem:[%s1539] sm:$0x1]
    %v1542 = vperm.slane %v1540, 0
    %v1552 = vunpack.c.l.b16 %v1531
    %v1553 = vunpack.c.l.b16 %v1532
    %v1554 = vunpack.c.l.b16 %v1533
    %v1555 = vunpack.c.l.b16 %v1534
    %v1556 = vunpack.c.l.b16 %v1535
    %v1557 = vunpack.c.l.b16 %v1536
    %v1558 = vunpack.c.l.b16 %v1537
    %v1559 = vunpack.c.l.b16 %v1538
    %v1560 = vpack.c.b16 %v1553, %v1552
    %v1561 = vpack.c.b16 %v1555, %v1554
    %v1562 = vpack.c.b16 %v1557, %v1556
    %v1563 = vpack.c.b16 %v1559, %v1558
    %1568 = vmatpush.bf16.msra.mxu0 0
    %1569 = vmatpush.bf16.msra.mxu0 0
    %1570 = vmatpush.bf16.msra.mxu0 0
    %1571 = vmatpush.bf16.msra.mxu0 0
    %1572 = vmatpush.bf16.msra.mxu0 %v1563
    %1573 = vmatpush.bf16.msra.mxu0 %v1562
    %1574 = vmatpush.bf16.msra.mxu0 %v1561
    %1575 = vmatpush.bf16.msra.mxu0 %v1560
    %1576 = vmatmul.bf16.gmra.mxu0 %v1394
    %v1577 = vpop.f32.mrf.mxu0
    %v1578 = vadd.f32 %v1542, %v1577
    %v1579 = vpop.f32.mrf.mxu0
    %v1580 = vadd.f32 %v1542, %v1579
    %1581 = vmatmul.bf16.gmra.mxu0 %v1397
    %v1582 = vpop.f32.mrf.mxu0
    %v1583 = vadd.f32 %v1542, %v1582
    %v1584 = vpop.f32.mrf.mxu0
    %v1585 = vadd.f32 %v1542, %v1584
    %1586 = vmatmul.bf16.gmra.mxu0 %v1400
    %v1587 = vpop.f32.mrf.mxu0
    %v1588 = vadd.f32 %v1542, %v1587
    %v1589 = vpop.f32.mrf.mxu0
    %v1590 = vadd.f32 %v1542, %v1589
    %1591 = vmatmul.bf16.gmra.mxu0 %v1403
    %v1592 = vpop.f32.mrf.mxu0
    %v1593 = vadd.f32 %v1542, %v1592
    %v1594 = vpop.f32.mrf.mxu0
    %v1595 = vadd.f32 %v1542, %v1594
    %1596 = vmatmul.bf16.gmra.mxu0 %v1406
    %v1597 = vpop.f32.mrf.mxu0
    %v1598 = vadd.f32 %v1542, %v1597
    %v1599 = vpop.f32.mrf.mxu0
    %v1600 = vadd.f32 %v1542, %v1599
    %1601 = vmatmul.bf16.gmra.mxu0 %v1409
    %v1602 = vpop.f32.mrf.mxu0
    %v1603 = vadd.f32 %v1542, %v1602
    %v1604 = vpop.f32.mrf.mxu0
    %v1605 = vadd.f32 %v1542, %v1604
    %1606 = vmatmul.bf16.gmra.mxu0 %v1412
    %v1607 = vpop.f32.mrf.mxu0
    %v1608 = vadd.f32 %v1542, %v1607
    %v1609 = vpop.f32.mrf.mxu0
    %v1610 = vadd.f32 %v1542, %v1609
    %1611 = vmatmul.bf16.gmra.mxu0 %v1415
    %v1612 = vpop.f32.mrf.mxu0
    %v1613 = vadd.f32 %v1542, %v1612
    %v1614 = vpop.f32.mrf.mxu0
    %v1615 = vadd.f32 %v1542, %v1614
    %1616 = vmatmul.bf16.gmra.mxu0 %v1418
    %v1617 = vpop.f32.mrf.mxu0
    %v1618 = vadd.f32 %v1542, %v1617
    %v1619 = vpop.f32.mrf.mxu0
    %v1620 = vadd.f32 %v1542, %v1619
    %1621 = vmatmul.bf16.gmra.mxu0 %v1421
    %v1622 = vpop.f32.mrf.mxu0
    %v1623 = vadd.f32 %v1542, %v1622
    %v1624 = vpop.f32.mrf.mxu0
    %v1625 = vadd.f32 %v1542, %v1624
    %1626 = vmatmul.bf16.gmra.mxu0 %v1424
    %v1627 = vpop.f32.mrf.mxu0
    %v1628 = vadd.f32 %v1542, %v1627
    %v1629 = vpop.f32.mrf.mxu0
    %v1630 = vadd.f32 %v1542, %v1629
    %1631 = vmatmul.bf16.gmra.mxu0 %v1427
    %v1632 = vpop.f32.mrf.mxu0
    %v1633 = vadd.f32 %v1542, %v1632
    %v1634 = vpop.f32.mrf.mxu0
    %v1635 = vadd.f32 %v1542, %v1634
    %1636 = vmatmul.bf16.gmra.mxu0 %v1430
    %v1637 = vpop.f32.mrf.mxu0
    %v1638 = vadd.f32 %v1542, %v1637
    %v1639 = vpop.f32.mrf.mxu0
    %v1640 = vadd.f32 %v1542, %v1639
    %1641 = vmatmul.bf16.gmra.mxu0 %v1433
    %v1642 = vpop.f32.mrf.mxu0
    %v1643 = vadd.f32 %v1542, %v1642
    %v1644 = vpop.f32.mrf.mxu0
    %v1645 = vadd.f32 %v1542, %v1644
    %1646 = vmatmul.bf16.gmra.mxu0 %v1436
    %v1647 = vpop.f32.mrf.mxu0
    %v1648 = vadd.f32 %v1542, %v1647
    %v1649 = vpop.f32.mrf.mxu0
    %v1650 = vadd.f32 %v1542, %v1649
    %1651 = vmatmul.bf16.gmra.mxu0 %v1439
    %v1652 = vpop.f32.mrf.mxu0
    %v1653 = vadd.f32 %v1542, %v1652
    %v1654 = vpop.f32.mrf.mxu0
    %v1655 = vadd.f32 %v1542, %v1654
    %1656 = vdwg.mxu0
    %s1657 = scalar_lea.vmem %s3, 64
    %v1658 = vld [vmem:[%s1657] sm:$0xf]
    %v1659 = vld [vmem:[%s1657 + $0x4] sm:$0xf]
    %v1660 = vld [vmem:[%s1657 + $0x8] sm:$0xf]
    %v1661 = vld [vmem:[%s1657 + $0xc] sm:$0xf]
    %v1662 = vld [vmem:[%s1657 + $0x10] sm:$0xf]
    %v1663 = vld [vmem:[%s1657 + $0x14] sm:$0xf]
    %v1664 = vld [vmem:[%s1657 + $0x18] sm:$0xf]
    %v1665 = vld [vmem:[%s1657 + $0x1c] sm:$0xf]
    %s1666 = scalar_lea.vmem %s4, 2
    %v1667 = vld [vmem:[%s1666] sm:$0x1]
    %v1669 = vperm.slane %v1667, 0
    %v1679 = vunpack.c.l.b16 %v1658
    %v1680 = vunpack.c.l.b16 %v1659
    %v1681 = vunpack.c.l.b16 %v1660
    %v1682 = vunpack.c.l.b16 %v1661
    %v1683 = vunpack.c.l.b16 %v1662
    %v1684 = vunpack.c.l.b16 %v1663
    %v1685 = vunpack.c.l.b16 %v1664
    %v1686 = vunpack.c.l.b16 %v1665
    %v1687 = vpack.c.b16 %v1680, %v1679
    %v1688 = vpack.c.b16 %v1682, %v1681
    %v1689 = vpack.c.b16 %v1684, %v1683
    %v1690 = vpack.c.b16 %v1686, %v1685
    %1695 = vmatpush.bf16.msra.mxu0 0
    %1696 = vmatpush.bf16.msra.mxu0 0
    %1697 = vmatpush.bf16.msra.mxu0 0
    %1698 = vmatpush.bf16.msra.mxu0 0
    %1699 = vmatpush.bf16.msra.mxu0 %v1690
    %1700 = vmatpush.bf16.msra.mxu0 %v1689
    %1701 = vmatpush.bf16.msra.mxu0 %v1688
    %1702 = vmatpush.bf16.msra.mxu0 %v1687
    %1703 = vmatmul.bf16.gmra.mxu0 %v1394
    %v1704 = vpop.f32.mrf.mxu0
    %v1705 = vadd.f32 %v1669, %v1704
    %v1706 = vpop.f32.mrf.mxu0
    %v1707 = vadd.f32 %v1669, %v1706
    %1708 = vmatmul.bf16.gmra.mxu0 %v1397
    %v1709 = vpop.f32.mrf.mxu0
    %v1710 = vadd.f32 %v1669, %v1709
    %v1711 = vpop.f32.mrf.mxu0
    %v1712 = vadd.f32 %v1669, %v1711
    %1713 = vmatmul.bf16.gmra.mxu0 %v1400
    %v1714 = vpop.f32.mrf.mxu0
    %v1715 = vadd.f32 %v1669, %v1714
    %v1716 = vpop.f32.mrf.mxu0
    %v1717 = vadd.f32 %v1669, %v1716
    %1718 = vmatmul.bf16.gmra.mxu0 %v1403
    %v1719 = vpop.f32.mrf.mxu0
    %v1720 = vadd.f32 %v1669, %v1719
    %v1721 = vpop.f32.mrf.mxu0
    %v1722 = vadd.f32 %v1669, %v1721
    %1723 = vmatmul.bf16.gmra.mxu0 %v1406
    %v1724 = vpop.f32.mrf.mxu0
    %v1725 = vadd.f32 %v1669, %v1724
    %v1726 = vpop.f32.mrf.mxu0
    %v1727 = vadd.f32 %v1669, %v1726
    %1728 = vmatmul.bf16.gmra.mxu0 %v1409
    %v1729 = vpop.f32.mrf.mxu0
    %v1730 = vadd.f32 %v1669, %v1729
    %v1731 = vpop.f32.mrf.mxu0
    %v1732 = vadd.f32 %v1669, %v1731
    %1733 = vmatmul.bf16.gmra.mxu0 %v1412
    %v1734 = vpop.f32.mrf.mxu0
    %v1735 = vadd.f32 %v1669, %v1734
    %v1736 = vpop.f32.mrf.mxu0
    %v1737 = vadd.f32 %v1669, %v1736
    %1738 = vmatmul.bf16.gmra.mxu0 %v1415
    %v1739 = vpop.f32.mrf.mxu0
    %v1740 = vadd.f32 %v1669, %v1739
    %v1741 = vpop.f32.mrf.mxu0
    %v1742 = vadd.f32 %v1669, %v1741
    %1743 = vmatmul.bf16.gmra.mxu0 %v1418
    %v1744 = vpop.f32.mrf.mxu0
    %v1745 = vadd.f32 %v1669, %v1744
    %v1746 = vpop.f32.mrf.mxu0
    %v1747 = vadd.f32 %v1669, %v1746
    %1748 = vmatmul.bf16.gmra.mxu0 %v1421
    %v1749 = vpop.f32.mrf.mxu0
    %v1750 = vadd.f32 %v1669, %v1749
    %v1751 = vpop.f32.mrf.mxu0
    %v1752 = vadd.f32 %v1669, %v1751
    %1753 = vmatmul.bf16.gmra.mxu0 %v1424
    %v1754 = vpop.f32.mrf.mxu0
    %v1755 = vadd.f32 %v1669, %v1754
    %v1756 = vpop.f32.mrf.mxu0
    %v1757 = vadd.f32 %v1669, %v1756
    %1758 = vmatmul.bf16.gmra.mxu0 %v1427
    %v1759 = vpop.f32.mrf.mxu0
    %v1760 = vadd.f32 %v1669, %v1759
    %v1761 = vpop.f32.mrf.mxu0
    %v1762 = vadd.f32 %v1669, %v1761
    %1763 = vmatmul.bf16.gmra.mxu0 %v1430
    %v1764 = vpop.f32.mrf.mxu0
    %v1765 = vadd.f32 %v1669, %v1764
    %v1766 = vpop.f32.mrf.mxu0
    %v1767 = vadd.f32 %v1669, %v1766
    %1768 = vmatmul.bf16.gmra.mxu0 %v1433
    %v1769 = vpop.f32.mrf.mxu0
    %v1770 = vadd.f32 %v1669, %v1769
    %v1771 = vpop.f32.mrf.mxu0
    %v1772 = vadd.f32 %v1669, %v1771
    %1773 = vmatmul.bf16.gmra.mxu0 %v1436
    %v1774 = vpop.f32.mrf.mxu0
    %v1775 = vadd.f32 %v1669, %v1774
    %v1776 = vpop.f32.mrf.mxu0
    %v1777 = vadd.f32 %v1669, %v1776
    %1778 = vmatmul.bf16.gmra.mxu0 %v1439
    %v1779 = vpop.f32.mrf.mxu0
    %v1780 = vadd.f32 %v1669, %v1779
    %v1781 = vpop.f32.mrf.mxu0
    %v1782 = vadd.f32 %v1669, %v1781
    %1783 = vdwg.mxu0
    %v1784 = vpack.c.bf16 %v1451, %v1451
    %v1785 = vpack.c.bf16 %v1453, %v1453
    %v1786 = vpack.c.bf16 %v1456, %v1456
    %v1787 = vpack.c.bf16 %v1458, %v1458
    %v1788 = vpack.c.bf16 %v1461, %v1461
    %v1789 = vpack.c.bf16 %v1463, %v1463
    %v1790 = vpack.c.bf16 %v1466, %v1466
    %v1791 = vpack.c.bf16 %v1468, %v1468
    %v1792 = vpack.c.bf16 %v1471, %v1471
    %v1793 = vpack.c.bf16 %v1473, %v1473
    %v1794 = vpack.c.bf16 %v1476, %v1476
    %v1795 = vpack.c.bf16 %v1478, %v1478
    %v1796 = vpack.c.bf16 %v1481, %v1481
    %v1797 = vpack.c.bf16 %v1483, %v1483
    %v1798 = vpack.c.bf16 %v1486, %v1486
    %v1799 = vpack.c.bf16 %v1488, %v1488
    %v1800 = vpack.c.bf16 %v1491, %v1491
    %v1801 = vpack.c.bf16 %v1493, %v1493
    %v1802 = vpack.c.bf16 %v1496, %v1496
    %v1803 = vpack.c.bf16 %v1498, %v1498
    %v1804 = vpack.c.bf16 %v1501, %v1501
    %v1805 = vpack.c.bf16 %v1503, %v1503
    %v1806 = vpack.c.bf16 %v1506, %v1506
    %v1807 = vpack.c.bf16 %v1508, %v1508
    %v1808 = vpack.c.bf16 %v1511, %v1511
    %v1809 = vpack.c.bf16 %v1513, %v1513
    %v1810 = vpack.c.bf16 %v1516, %v1516
    %v1811 = vpack.c.bf16 %v1518, %v1518
    %v1812 = vpack.c.bf16 %v1521, %v1521
    %v1813 = vpack.c.bf16 %v1523, %v1523
    %v1814 = vpack.c.bf16 %v1526, %v1526
    %v1815 = vpack.c.bf16 %v1528, %v1528
    %v1816 = vpack.c.bf16 %v1578, %v1578
    %v1817 = vpack.c.bf16 %v1580, %v1580
    %v1818 = vpack.c.bf16 %v1583, %v1583
    %v1819 = vpack.c.bf16 %v1585, %v1585
    %v1820 = vpack.c.bf16 %v1588, %v1588
    %v1821 = vpack.c.bf16 %v1590, %v1590
    %v1822 = vpack.c.bf16 %v1593, %v1593
    %v1823 = vpack.c.bf16 %v1595, %v1595
    %v1824 = vpack.c.bf16 %v1598, %v1598
    %v1825 = vpack.c.bf16 %v1600, %v1600
    %v1826 = vpack.c.bf16 %v1603, %v1603
    %v1827 = vpack.c.bf16 %v1605, %v1605
    %v1828 = vpack.c.bf16 %v1608, %v1608
    %v1829 = vpack.c.bf16 %v1610, %v1610
    %v1830 = vpack.c.bf16 %v1613, %v1613
    %v1831 = vpack.c.bf16 %v1615, %v1615
    %v1832 = vpack.c.bf16 %v1618, %v1618
    %v1833 = vpack.c.bf16 %v1620, %v1620
    %v1834 = vpack.c.bf16 %v1623, %v1623
    %v1835 = vpack.c.bf16 %v1625, %v1625
    %v1836 = vpack.c.bf16 %v1628, %v1628
    %v1837 = vpack.c.bf16 %v1630, %v1630
    %v1838 = vpack.c.bf16 %v1633, %v1633
    %v1839 = vpack.c.bf16 %v1635, %v1635
    %v1840 = vpack.c.bf16 %v1638, %v1638
    %v1841 = vpack.c.bf16 %v1640, %v1640
    %v1842 = vpack.c.bf16 %v1643, %v1643
    %v1843 = vpack.c.bf16 %v1645, %v1645
    %v1844 = vpack.c.bf16 %v1648, %v1648
    %v1845 = vpack.c.bf16 %v1650, %v1650
    %v1846 = vpack.c.bf16 %v1653, %v1653
    %v1847 = vpack.c.bf16 %v1655, %v1655
    %v1856 = vunpack.c.l.b16 %v1784
    %v1857 = vunpack.c.l.b16 %v1785
    %v1858 = vunpack.c.l.b16 %v1786
    %v1859 = vunpack.c.l.b16 %v1787
    %v1860 = vunpack.c.l.b16 %v1788
    %v1861 = vunpack.c.l.b16 %v1789
    %v1862 = vunpack.c.l.b16 %v1790
    %v1863 = vunpack.c.l.b16 %v1791
    %v1864 = vpack.c.b16 %v1857, %v1856
    %v1865 = vpack.c.b16 %v1859, %v1858
    %v1866 = vpack.c.b16 %v1861, %v1860
    %v1867 = vpack.c.b16 %v1863, %v1862
    %v1876 = vunpack.c.l.b16 %v1816
    %v1877 = vunpack.c.l.b16 %v1817
    %v1878 = vunpack.c.l.b16 %v1818
    %v1879 = vunpack.c.l.b16 %v1819
    %v1880 = vunpack.c.l.b16 %v1820
    %v1881 = vunpack.c.l.b16 %v1821
    %v1882 = vunpack.c.l.b16 %v1822
    %v1883 = vunpack.c.l.b16 %v1823
    %v1884 = vpack.c.b16 %v1877, %v1876
    %v1885 = vpack.c.b16 %v1879, %v1878
    %v1886 = vpack.c.b16 %v1881, %v1880
    %v1887 = vpack.c.b16 %v1883, %v1882
    %v1889 = vsel %vm155, %v1864, 0
    %v1892 = vsel %vm155, %v1865, 0
    %v1895 = vsel %vm155, %v1866, 0
    %v1898 = vsel %vm155, %v1867, 0
    %v1901 = vsel %vm155, %v1884, 0
    %v1904 = vsel %vm155, %v1885, 0
    %v1907 = vsel %vm155, %v1886, 0
    %v1910 = vsel %vm155, %v1887, 0
    %1912 = vmatpush.bf16.xpose.msra.mxu0 0
    %1913 = vmatpush.bf16.xpose.msra.mxu0 0
    %1914 = vmatpush.bf16.xpose.msra.mxu0 0
    %1915 = vmatpush.bf16.xpose.msra.mxu0 0
    %1916 = vmatpush.bf16.xpose.msra.mxu0 %v1910
    %1917 = vmatpush.bf16.xpose.msra.mxu0 %v1907
    %1918 = vmatpush.bf16.xpose.msra.mxu0 %v1904
    %1919 = vmatpush.bf16.xpose.msra.mxu0 %v1901
    %1920 = vmatmul.bf16.gmra.mxu0 %v1889
    %v1921 = vpop.f32.mrf.mxu0
    %v1922 = vadd.f32 0.0, %v1921
    %v1923 = vpop.f32.mrf.mxu0
    %v1924 = vadd.f32 0.0, %v1923
    %1925 = vmatmul.bf16.gmra.mxu0 %v1892
    %v1926 = vpop.f32.mrf.mxu0
    %v1927 = vadd.f32 0.0, %v1926
    %v1928 = vpop.f32.mrf.mxu0
    %v1929 = vadd.f32 0.0, %v1928
    %1930 = vmatmul.bf16.gmra.mxu0 %v1895
    %v1931 = vpop.f32.mrf.mxu0
    %v1932 = vadd.f32 0.0, %v1931
    %v1933 = vpop.f32.mrf.mxu0
    %v1934 = vadd.f32 0.0, %v1933
    %1935 = vmatmul.bf16.gmra.mxu0 %v1898
    %v1936 = vpop.f32.mrf.mxu0
    %v1937 = vadd.f32 0.0, %v1936
    %v1938 = vpop.f32.mrf.mxu0
    %v1939 = vadd.f32 0.0, %v1938
    %1940 = vdwg.mxu0
    %v1949 = vunpack.c.l.b16 %v1792
    %v1950 = vunpack.c.l.b16 %v1793
    %v1951 = vunpack.c.l.b16 %v1794
    %v1952 = vunpack.c.l.b16 %v1795
    %v1953 = vunpack.c.l.b16 %v1796
    %v1954 = vunpack.c.l.b16 %v1797
    %v1955 = vunpack.c.l.b16 %v1798
    %v1956 = vunpack.c.l.b16 %v1799
    %v1957 = vpack.c.b16 %v1950, %v1949
    %v1958 = vpack.c.b16 %v1952, %v1951
    %v1959 = vpack.c.b16 %v1954, %v1953
    %v1960 = vpack.c.b16 %v1956, %v1955
    %v1969 = vunpack.c.l.b16 %v1824
    %v1970 = vunpack.c.l.b16 %v1825
    %v1971 = vunpack.c.l.b16 %v1826
    %v1972 = vunpack.c.l.b16 %v1827
    %v1973 = vunpack.c.l.b16 %v1828
    %v1974 = vunpack.c.l.b16 %v1829
    %v1975 = vunpack.c.l.b16 %v1830
    %v1976 = vunpack.c.l.b16 %v1831
    %v1977 = vpack.c.b16 %v1970, %v1969
    %v1978 = vpack.c.b16 %v1972, %v1971
    %v1979 = vpack.c.b16 %v1974, %v1973
    %v1980 = vpack.c.b16 %v1976, %v1975
    %v1982 = vsel %vm155, %v1957, 0
    %v1985 = vsel %vm155, %v1958, 0
    %v1988 = vsel %vm155, %v1959, 0
    %v1991 = vsel %vm155, %v1960, 0
    %v1994 = vsel %vm155, %v1977, 0
    %v1997 = vsel %vm155, %v1978, 0
    %v2000 = vsel %vm155, %v1979, 0
    %v2003 = vsel %vm155, %v1980, 0
    %2005 = vmatpush.bf16.xpose.msra.mxu0 0
    %2006 = vmatpush.bf16.xpose.msra.mxu0 0
    %2007 = vmatpush.bf16.xpose.msra.mxu0 0
    %2008 = vmatpush.bf16.xpose.msra.mxu0 0
    %2009 = vmatpush.bf16.xpose.msra.mxu0 %v2003
    %2010 = vmatpush.bf16.xpose.msra.mxu0 %v2000
    %2011 = vmatpush.bf16.xpose.msra.mxu0 %v1997
    %2012 = vmatpush.bf16.xpose.msra.mxu0 %v1994
    %2013 = vmatmul.bf16.gmra.mxu0 %v1982
    %v2014 = vpop.f32.mrf.mxu0
    %v2015 = vadd.f32 0.0, %v2014
    %v2016 = vpop.f32.mrf.mxu0
    %v2017 = vadd.f32 0.0, %v2016
    %2018 = vmatmul.bf16.gmra.mxu0 %v1985
    %v2019 = vpop.f32.mrf.mxu0
    %v2020 = vadd.f32 0.0, %v2019
    %v2021 = vpop.f32.mrf.mxu0
    %v2022 = vadd.f32 0.0, %v2021
    %2023 = vmatmul.bf16.gmra.mxu0 %v1988
    %v2024 = vpop.f32.mrf.mxu0
    %v2025 = vadd.f32 0.0, %v2024
    %v2026 = vpop.f32.mrf.mxu0
    %v2027 = vadd.f32 0.0, %v2026
    %2028 = vmatmul.bf16.gmra.mxu0 %v1991
    %v2029 = vpop.f32.mrf.mxu0
    %v2030 = vadd.f32 0.0, %v2029
    %v2031 = vpop.f32.mrf.mxu0
    %v2032 = vadd.f32 0.0, %v2031
    %2033 = vdwg.mxu0
    %v2042 = vunpack.c.l.b16 %v1800
    %v2043 = vunpack.c.l.b16 %v1801
    %v2044 = vunpack.c.l.b16 %v1802
    %v2045 = vunpack.c.l.b16 %v1803
    %v2046 = vunpack.c.l.b16 %v1804
    %v2047 = vunpack.c.l.b16 %v1805
    %v2048 = vunpack.c.l.b16 %v1806
    %v2049 = vunpack.c.l.b16 %v1807
    %v2050 = vpack.c.b16 %v2043, %v2042
    %v2051 = vpack.c.b16 %v2045, %v2044
    %v2052 = vpack.c.b16 %v2047, %v2046
    %v2053 = vpack.c.b16 %v2049, %v2048
    %v2062 = vunpack.c.l.b16 %v1832
    %v2063 = vunpack.c.l.b16 %v1833
    %v2064 = vunpack.c.l.b16 %v1834
    %v2065 = vunpack.c.l.b16 %v1835
    %v2066 = vunpack.c.l.b16 %v1836
    %v2067 = vunpack.c.l.b16 %v1837
    %v2068 = vunpack.c.l.b16 %v1838
    %v2069 = vunpack.c.l.b16 %v1839
    %v2070 = vpack.c.b16 %v2063, %v2062
    %v2071 = vpack.c.b16 %v2065, %v2064
    %v2072 = vpack.c.b16 %v2067, %v2066
    %v2073 = vpack.c.b16 %v2069, %v2068
    %v2075 = vsel %vm155, %v2050, 0
    %v2078 = vsel %vm155, %v2051, 0
    %v2081 = vsel %vm155, %v2052, 0
    %v2084 = vsel %vm155, %v2053, 0
    %v2087 = vsel %vm155, %v2070, 0
    %v2090 = vsel %vm155, %v2071, 0
    %v2093 = vsel %vm155, %v2072, 0
    %v2096 = vsel %vm155, %v2073, 0
    %2098 = vmatpush.bf16.xpose.msra.mxu0 0
    %2099 = vmatpush.bf16.xpose.msra.mxu0 0
    %2100 = vmatpush.bf16.xpose.msra.mxu0 0
    %2101 = vmatpush.bf16.xpose.msra.mxu0 0
    %2102 = vmatpush.bf16.xpose.msra.mxu0 %v2096
    %2103 = vmatpush.bf16.xpose.msra.mxu0 %v2093
    %2104 = vmatpush.bf16.xpose.msra.mxu0 %v2090
    %2105 = vmatpush.bf16.xpose.msra.mxu0 %v2087
    %2106 = vmatmul.bf16.gmra.mxu0 %v2075
    %v2107 = vpop.f32.mrf.mxu0
    %v2108 = vadd.f32 0.0, %v2107
    %v2109 = vpop.f32.mrf.mxu0
    %v2110 = vadd.f32 0.0, %v2109
    %2111 = vmatmul.bf16.gmra.mxu0 %v2078
    %v2112 = vpop.f32.mrf.mxu0
    %v2113 = vadd.f32 0.0, %v2112
    %v2114 = vpop.f32.mrf.mxu0
    %v2115 = vadd.f32 0.0, %v2114
    %2116 = vmatmul.bf16.gmra.mxu0 %v2081
    %v2117 = vpop.f32.mrf.mxu0
    %v2118 = vadd.f32 0.0, %v2117
    %v2119 = vpop.f32.mrf.mxu0
    %v2120 = vadd.f32 0.0, %v2119
    %2121 = vmatmul.bf16.gmra.mxu0 %v2084
    %v2122 = vpop.f32.mrf.mxu0
    %v2123 = vadd.f32 0.0, %v2122
    %v2124 = vpop.f32.mrf.mxu0
    %v2125 = vadd.f32 0.0, %v2124
    %2126 = vdwg.mxu0
    %v2135 = vunpack.c.l.b16 %v1808
    %v2136 = vunpack.c.l.b16 %v1809
    %v2137 = vunpack.c.l.b16 %v1810
    %v2138 = vunpack.c.l.b16 %v1811
    %v2139 = vunpack.c.l.b16 %v1812
    %v2140 = vunpack.c.l.b16 %v1813
    %v2141 = vunpack.c.l.b16 %v1814
    %v2142 = vunpack.c.l.b16 %v1815
    %v2143 = vpack.c.b16 %v2136, %v2135
    %v2144 = vpack.c.b16 %v2138, %v2137
    %v2145 = vpack.c.b16 %v2140, %v2139
    %v2146 = vpack.c.b16 %v2142, %v2141
    %v2155 = vunpack.c.l.b16 %v1840
    %v2156 = vunpack.c.l.b16 %v1841
    %v2157 = vunpack.c.l.b16 %v1842
    %v2158 = vunpack.c.l.b16 %v1843
    %v2159 = vunpack.c.l.b16 %v1844
    %v2160 = vunpack.c.l.b16 %v1845
    %v2161 = vunpack.c.l.b16 %v1846
    %v2162 = vunpack.c.l.b16 %v1847
    %v2163 = vpack.c.b16 %v2156, %v2155
    %v2164 = vpack.c.b16 %v2158, %v2157
    %v2165 = vpack.c.b16 %v2160, %v2159
    %v2166 = vpack.c.b16 %v2162, %v2161
    %v2168 = vsel %vm155, %v2143, 0
    %v2171 = vsel %vm155, %v2144, 0
    %v2174 = vsel %vm155, %v2145, 0
    %v2177 = vsel %vm155, %v2146, 0
    %v2180 = vsel %vm155, %v2163, 0
    %v2183 = vsel %vm155, %v2164, 0
    %v2186 = vsel %vm155, %v2165, 0
    %v2189 = vsel %vm155, %v2166, 0
    %2191 = vmatpush.bf16.xpose.msra.mxu0 0
    %2192 = vmatpush.bf16.xpose.msra.mxu0 0
    %2193 = vmatpush.bf16.xpose.msra.mxu0 0
    %2194 = vmatpush.bf16.xpose.msra.mxu0 0
    %2195 = vmatpush.bf16.xpose.msra.mxu0 %v2189
    %2196 = vmatpush.bf16.xpose.msra.mxu0 %v2186
    %2197 = vmatpush.bf16.xpose.msra.mxu0 %v2183
    %2198 = vmatpush.bf16.xpose.msra.mxu0 %v2180
    %2199 = vmatmul.bf16.gmra.mxu0 %v2168
    %v2200 = vpop.f32.mrf.mxu0
    %v2201 = vadd.f32 0.0, %v2200
    %v2202 = vpop.f32.mrf.mxu0
    %v2203 = vadd.f32 0.0, %v2202
    %2204 = vmatmul.bf16.gmra.mxu0 %v2171
    %v2205 = vpop.f32.mrf.mxu0
    %v2206 = vadd.f32 0.0, %v2205
    %v2207 = vpop.f32.mrf.mxu0
    %v2208 = vadd.f32 0.0, %v2207
    %2209 = vmatmul.bf16.gmra.mxu0 %v2174
    %v2210 = vpop.f32.mrf.mxu0
    %v2211 = vadd.f32 0.0, %v2210
    %v2212 = vpop.f32.mrf.mxu0
    %v2213 = vadd.f32 0.0, %v2212
    %2214 = vmatmul.bf16.gmra.mxu0 %v2177
    %v2215 = vpop.f32.mrf.mxu0
    %v2216 = vadd.f32 0.0, %v2215
    %v2217 = vpop.f32.mrf.mxu0
    %v2218 = vadd.f32 0.0, %v2217
    %2219 = vdwg.mxu0
    %v2220 = vsel %vm155, %v1922, -inf
    %2221 = vmax.xlane.f32.xlu0 %v2220
    %v2222 = vpop.xlane.xlu0 %2221
    %v2223 = vsel %vm155, %v1924, -inf
    %2224 = vmax.xlane.f32.xlu0 %v2223
    %v2225 = vpop.xlane.xlu0 %2224
    %v2226 = vsel %vm155, %v1927, -inf
    %2227 = vmax.xlane.f32.xlu0 %v2226
    %v2228 = vpop.xlane.xlu0 %2227
    %v2229 = vsel %vm155, %v1929, -inf
    %2230 = vmax.xlane.f32.xlu0 %v2229
    %v2231 = vpop.xlane.xlu0 %2230
    %v2232 = vsel %vm155, %v1932, -inf
    %2233 = vmax.xlane.f32.xlu0 %v2232
    %v2234 = vpop.xlane.xlu0 %2233
    %v2235 = vsel %vm155, %v1934, -inf
    %2236 = vmax.xlane.f32.xlu0 %v2235
    %v2237 = vpop.xlane.xlu0 %2236
    %v2238 = vsel %vm155, %v1937, -inf
    %2239 = vmax.xlane.f32.xlu0 %v2238
    %v2240 = vpop.xlane.xlu0 %2239
    %v2241 = vsel %vm155, %v1939, -inf
    %2242 = vmax.xlane.f32.xlu0 %v2241
    %v2243 = vpop.xlane.xlu0 %2242
    %v2244 = vsel %vm155, %v2015, -inf
    %2245 = vmax.xlane.f32.xlu0 %v2244
    %v2246 = vpop.xlane.xlu0 %2245
    %v2247 = vsel %vm155, %v2017, -inf
    %2248 = vmax.xlane.f32.xlu0 %v2247
    %v2249 = vpop.xlane.xlu0 %2248
    %v2250 = vsel %vm155, %v2020, -inf
    %2251 = vmax.xlane.f32.xlu0 %v2250
    %v2252 = vpop.xlane.xlu0 %2251
    %v2253 = vsel %vm155, %v2022, -inf
    %2254 = vmax.xlane.f32.xlu0 %v2253
    %v2255 = vpop.xlane.xlu0 %2254
    %v2256 = vsel %vm155, %v2025, -inf
    %2257 = vmax.xlane.f32.xlu0 %v2256
    %v2258 = vpop.xlane.xlu0 %2257
    %v2259 = vsel %vm155, %v2027, -inf
    %2260 = vmax.xlane.f32.xlu0 %v2259
    %v2261 = vpop.xlane.xlu0 %2260
    %v2262 = vsel %vm155, %v2030, -inf
    %2263 = vmax.xlane.f32.xlu0 %v2262
    %v2264 = vpop.xlane.xlu0 %2263
    %v2265 = vsel %vm155, %v2032, -inf
    %2266 = vmax.xlane.f32.xlu0 %v2265
    %v2267 = vpop.xlane.xlu0 %2266
    %v2268 = vsel %vm155, %v2108, -inf
    %2269 = vmax.xlane.f32.xlu0 %v2268
    %v2270 = vpop.xlane.xlu0 %2269
    %v2271 = vsel %vm155, %v2110, -inf
    %2272 = vmax.xlane.f32.xlu0 %v2271
    %v2273 = vpop.xlane.xlu0 %2272
    %v2274 = vsel %vm155, %v2113, -inf
    %2275 = vmax.xlane.f32.xlu0 %v2274
    %v2276 = vpop.xlane.xlu0 %2275
    %v2277 = vsel %vm155, %v2115, -inf
    %2278 = vmax.xlane.f32.xlu0 %v2277
    %v2279 = vpop.xlane.xlu0 %2278
    %v2280 = vsel %vm155, %v2118, -inf
    %2281 = vmax.xlane.f32.xlu0 %v2280
    %v2282 = vpop.xlane.xlu0 %2281
    %v2283 = vsel %vm155, %v2120, -inf
    %2284 = vmax.xlane.f32.xlu0 %v2283
    %v2285 = vpop.xlane.xlu0 %2284
    %v2286 = vsel %vm155, %v2123, -inf
    %2287 = vmax.xlane.f32.xlu0 %v2286
    %v2288 = vpop.xlane.xlu0 %2287
    %v2289 = vsel %vm155, %v2125, -inf
    %2290 = vmax.xlane.f32.xlu0 %v2289
    %v2291 = vpop.xlane.xlu0 %2290
    %v2292 = vsel %vm155, %v2201, -inf
    %2293 = vmax.xlane.f32.xlu0 %v2292
    %v2294 = vpop.xlane.xlu0 %2293
    %v2295 = vsel %vm155, %v2203, -inf
    %2296 = vmax.xlane.f32.xlu0 %v2295
    %v2297 = vpop.xlane.xlu0 %2296
    %v2298 = vsel %vm155, %v2206, -inf
    %2299 = vmax.xlane.f32.xlu0 %v2298
    %v2300 = vpop.xlane.xlu0 %2299
    %v2301 = vsel %vm155, %v2208, -inf
    %2302 = vmax.xlane.f32.xlu0 %v2301
    %v2303 = vpop.xlane.xlu0 %2302
    %v2304 = vsel %vm155, %v2211, -inf
    %2305 = vmax.xlane.f32.xlu0 %v2304
    %v2306 = vpop.xlane.xlu0 %2305
    %v2307 = vsel %vm155, %v2213, -inf
    %2308 = vmax.xlane.f32.xlu0 %v2307
    %v2309 = vpop.xlane.xlu0 %2308
    %v2310 = vsel %vm155, %v2216, -inf
    %2311 = vmax.xlane.f32.xlu0 %v2310
    %v2312 = vpop.xlane.xlu0 %2311
    %v2313 = vsel %vm155, %v2218, -inf
    %2314 = vmax.xlane.f32.xlu0 %v2313
    %v2315 = vpop.xlane.xlu0 %2314
    %v2316 = vsub.f32 %v1922, %v2222
    %v2317 = vsub.f32 %v1924, %v2225
    %v2318 = vsub.f32 %v1927, %v2228
    %v2319 = vsub.f32 %v1929, %v2231
    %v2320 = vsub.f32 %v1932, %v2234
    %v2321 = vsub.f32 %v1934, %v2237
    %v2322 = vsub.f32 %v1937, %v2240
    %v2323 = vsub.f32 %v1939, %v2243
    %v2324 = vsub.f32 %v2015, %v2246
    %v2325 = vsub.f32 %v2017, %v2249
    %v2326 = vsub.f32 %v2020, %v2252
    %v2327 = vsub.f32 %v2022, %v2255
    %v2328 = vsub.f32 %v2025, %v2258
    %v2329 = vsub.f32 %v2027, %v2261
    %v2330 = vsub.f32 %v2030, %v2264
    %v2331 = vsub.f32 %v2032, %v2267
    %v2332 = vsub.f32 %v2108, %v2270
    %v2333 = vsub.f32 %v2110, %v2273
    %v2334 = vsub.f32 %v2113, %v2276
    %v2335 = vsub.f32 %v2115, %v2279
    %v2336 = vsub.f32 %v2118, %v2282
    %v2337 = vsub.f32 %v2120, %v2285
    %v2338 = vsub.f32 %v2123, %v2288
    %v2339 = vsub.f32 %v2125, %v2291
    %v2340 = vsub.f32 %v2201, %v2294
    %v2341 = vsub.f32 %v2203, %v2297
    %v2342 = vsub.f32 %v2206, %v2300
    %v2343 = vsub.f32 %v2208, %v2303
    %v2344 = vsub.f32 %v2211, %v2306
    %v2345 = vsub.f32 %v2213, %v2309
    %v2346 = vsub.f32 %v2216, %v2312
    %v2347 = vsub.f32 %v2218, %v2315
    %v2348 = vmul.f32 %v2316, 1.442695
    %v2349 = vpow.pop %v2348
    %v2350 = vmul.f32 %v2317, 1.442695
    %v2351 = vpow.pop %v2350
    %v2352 = vmul.f32 %v2318, 1.442695
    %v2353 = vpow.pop %v2352
    %v2354 = vmul.f32 %v2319, 1.442695
    %v2355 = vpow.pop %v2354
    %v2356 = vmul.f32 %v2320, 1.442695
    %v2357 = vpow.pop %v2356
    %v2358 = vmul.f32 %v2321, 1.442695
    %v2359 = vpow.pop %v2358
    %v2360 = vmul.f32 %v2322, 1.442695
    %v2361 = vpow.pop %v2360
    %v2362 = vmul.f32 %v2323, 1.442695
    %v2363 = vpow.pop %v2362
    %v2364 = vmul.f32 %v2324, 1.442695
    %v2365 = vpow.pop %v2364
    %v2366 = vmul.f32 %v2325, 1.442695
    %v2367 = vpow.pop %v2366
    %v2368 = vmul.f32 %v2326, 1.442695
    %v2369 = vpow.pop %v2368
    %v2370 = vmul.f32 %v2327, 1.442695
    %v2371 = vpow.pop %v2370
    %v2372 = vmul.f32 %v2328, 1.442695
    %v2373 = vpow.pop %v2372
    %v2374 = vmul.f32 %v2329, 1.442695
    %v2375 = vpow.pop %v2374
    %v2376 = vmul.f32 %v2330, 1.442695
    %v2377 = vpow.pop %v2376
    %v2378 = vmul.f32 %v2331, 1.442695
    %v2379 = vpow.pop %v2378
    %v2380 = vmul.f32 %v2332, 1.442695
    %v2381 = vpow.pop %v2380
    %v2382 = vmul.f32 %v2333, 1.442695
    %v2383 = vpow.pop %v2382
    %v2384 = vmul.f32 %v2334, 1.442695
    %v2385 = vpow.pop %v2384
    %v2386 = vmul.f32 %v2335, 1.442695
    %v2387 = vpow.pop %v2386
    %v2388 = vmul.f32 %v2336, 1.442695
    %v2389 = vpow.pop %v2388
    %v2390 = vmul.f32 %v2337, 1.442695
    %v2391 = vpow.pop %v2390
    %v2392 = vmul.f32 %v2338, 1.442695
    %v2393 = vpow.pop %v2392
    %v2394 = vmul.f32 %v2339, 1.442695
    %v2395 = vpow.pop %v2394
    %v2396 = vmul.f32 %v2340, 1.442695
    %v2397 = vpow.pop %v2396
    %v2398 = vmul.f32 %v2341, 1.442695
    %v2399 = vpow.pop %v2398
    %v2400 = vmul.f32 %v2342, 1.442695
    %v2401 = vpow.pop %v2400
    %v2402 = vmul.f32 %v2343, 1.442695
    %v2403 = vpow.pop %v2402
    %v2404 = vmul.f32 %v2344, 1.442695
    %v2405 = vpow.pop %v2404
    %v2406 = vmul.f32 %v2345, 1.442695
    %v2407 = vpow.pop %v2406
    %v2408 = vmul.f32 %v2346, 1.442695
    %v2409 = vpow.pop %v2408
    %v2410 = vmul.f32 %v2347, 1.442695
    %v2411 = vpow.pop %v2410
    %v2412 = vsel %vm155, %v2349, 0.0
    %2413 = vadd.xlane.f32.xlu0 %v2412
    %v2414 = vpop.xlane.xlu0 %2413
    %v2415 = vsel %vm155, %v2351, 0.0
    %2416 = vadd.xlane.f32.xlu0 %v2415
    %v2417 = vpop.xlane.xlu0 %2416
    %v2418 = vsel %vm155, %v2353, 0.0
    %2419 = vadd.xlane.f32.xlu0 %v2418
    %v2420 = vpop.xlane.xlu0 %2419
    %v2421 = vsel %vm155, %v2355, 0.0
    %2422 = vadd.xlane.f32.xlu0 %v2421
    %v2423 = vpop.xlane.xlu0 %2422
    %v2424 = vsel %vm155, %v2357, 0.0
    %2425 = vadd.xlane.f32.xlu0 %v2424
    %v2426 = vpop.xlane.xlu0 %2425
    %v2427 = vsel %vm155, %v2359, 0.0
    %2428 = vadd.xlane.f32.xlu0 %v2427
    %v2429 = vpop.xlane.xlu0 %2428
    %v2430 = vsel %vm155, %v2361, 0.0
    %2431 = vadd.xlane.f32.xlu0 %v2430
    %v2432 = vpop.xlane.xlu0 %2431
    %v2433 = vsel %vm155, %v2363, 0.0
    %2434 = vadd.xlane.f32.xlu0 %v2433
    %v2435 = vpop.xlane.xlu0 %2434
    %v2436 = vsel %vm155, %v2365, 0.0
    %2437 = vadd.xlane.f32.xlu0 %v2436
    %v2438 = vpop.xlane.xlu0 %2437
    %v2439 = vsel %vm155, %v2367, 0.0
    %2440 = vadd.xlane.f32.xlu0 %v2439
    %v2441 = vpop.xlane.xlu0 %2440
    %v2442 = vsel %vm155, %v2369, 0.0
    %2443 = vadd.xlane.f32.xlu0 %v2442
    %v2444 = vpop.xlane.xlu0 %2443
    %v2445 = vsel %vm155, %v2371, 0.0
    %2446 = vadd.xlane.f32.xlu0 %v2445
    %v2447 = vpop.xlane.xlu0 %2446
    %v2448 = vsel %vm155, %v2373, 0.0
    %2449 = vadd.xlane.f32.xlu0 %v2448
    %v2450 = vpop.xlane.xlu0 %2449
    %v2451 = vsel %vm155, %v2375, 0.0
    %2452 = vadd.xlane.f32.xlu0 %v2451
    %v2453 = vpop.xlane.xlu0 %2452
    %v2454 = vsel %vm155, %v2377, 0.0
    %2455 = vadd.xlane.f32.xlu0 %v2454
    %v2456 = vpop.xlane.xlu0 %2455
    %v2457 = vsel %vm155, %v2379, 0.0
    %2458 = vadd.xlane.f32.xlu0 %v2457
    %v2459 = vpop.xlane.xlu0 %2458
    %v2460 = vsel %vm155, %v2381, 0.0
    %2461 = vadd.xlane.f32.xlu0 %v2460
    %v2462 = vpop.xlane.xlu0 %2461
    %v2463 = vsel %vm155, %v2383, 0.0
    %2464 = vadd.xlane.f32.xlu0 %v2463
    %v2465 = vpop.xlane.xlu0 %2464
    %v2466 = vsel %vm155, %v2385, 0.0
    %2467 = vadd.xlane.f32.xlu0 %v2466
    %v2468 = vpop.xlane.xlu0 %2467
    %v2469 = vsel %vm155, %v2387, 0.0
    %2470 = vadd.xlane.f32.xlu0 %v2469
    %v2471 = vpop.xlane.xlu0 %2470
    %v2472 = vsel %vm155, %v2389, 0.0
    %2473 = vadd.xlane.f32.xlu0 %v2472
    %v2474 = vpop.xlane.xlu0 %2473
    %v2475 = vsel %vm155, %v2391, 0.0
    %2476 = vadd.xlane.f32.xlu0 %v2475
    %v2477 = vpop.xlane.xlu0 %2476
    %v2478 = vsel %vm155, %v2393, 0.0
    %2479 = vadd.xlane.f32.xlu0 %v2478
    %v2480 = vpop.xlane.xlu0 %2479
    %v2481 = vsel %vm155, %v2395, 0.0
    %2482 = vadd.xlane.f32.xlu0 %v2481
    %v2483 = vpop.xlane.xlu0 %2482
    %v2484 = vsel %vm155, %v2397, 0.0
    %2485 = vadd.xlane.f32.xlu0 %v2484
    %v2486 = vpop.xlane.xlu0 %2485
    %v2487 = vsel %vm155, %v2399, 0.0
    %2488 = vadd.xlane.f32.xlu0 %v2487
    %v2489 = vpop.xlane.xlu0 %2488
    %v2490 = vsel %vm155, %v2401, 0.0
    %2491 = vadd.xlane.f32.xlu0 %v2490
    %v2492 = vpop.xlane.xlu0 %2491
    %v2493 = vsel %vm155, %v2403, 0.0
    %2494 = vadd.xlane.f32.xlu0 %v2493
    %v2495 = vpop.xlane.xlu0 %2494
    %v2496 = vsel %vm155, %v2405, 0.0
    %2497 = vadd.xlane.f32.xlu0 %v2496
    %v2498 = vpop.xlane.xlu0 %2497
    %v2499 = vsel %vm155, %v2407, 0.0
    %2500 = vadd.xlane.f32.xlu0 %v2499
    %v2501 = vpop.xlane.xlu0 %2500
    %v2502 = vsel %vm155, %v2409, 0.0
    %2503 = vadd.xlane.f32.xlu0 %v2502
    %v2504 = vpop.xlane.xlu0 %2503
    %v2505 = vsel %vm155, %v2411, 0.0
    %2506 = vadd.xlane.f32.xlu0 %v2505
    %v2507 = vpop.xlane.xlu0 %2506
    %v2508 = vrcp.pop %v2414
    %v2509 = vrcp.pop %v2417
    %v2510 = vrcp.pop %v2420
    %v2511 = vrcp.pop %v2423
    %v2512 = vrcp.pop %v2426
    %v2513 = vrcp.pop %v2429
    %v2514 = vrcp.pop %v2432
    %v2515 = vrcp.pop %v2435
    %v2516 = vrcp.pop %v2438
    %v2517 = vrcp.pop %v2441
    %v2518 = vrcp.pop %v2444
    %v2519 = vrcp.pop %v2447
    %v2520 = vrcp.pop %v2450
    %v2521 = vrcp.pop %v2453
    %v2522 = vrcp.pop %v2456
    %v2523 = vrcp.pop %v2459
    %v2524 = vrcp.pop %v2462
    %v2525 = vrcp.pop %v2465
    %v2526 = vrcp.pop %v2468
    %v2527 = vrcp.pop %v2471
    %v2528 = vrcp.pop %v2474
    %v2529 = vrcp.pop %v2477
    %v2530 = vrcp.pop %v2480
    %v2531 = vrcp.pop %v2483
    %v2532 = vrcp.pop %v2486
    %v2533 = vrcp.pop %v2489
    %v2534 = vrcp.pop %v2492
    %v2535 = vrcp.pop %v2495
    %v2536 = vrcp.pop %v2498
    %v2537 = vrcp.pop %v2501
    %v2538 = vrcp.pop %v2504
    %v2539 = vrcp.pop %v2507
    %v2540 = vmul.f32 %v2349, %v2508
    %v2541 = vmul.f32 %v2351, %v2509
    %v2542 = vmul.f32 %v2353, %v2510
    %v2543 = vmul.f32 %v2355, %v2511
    %v2544 = vmul.f32 %v2357, %v2512
    %v2545 = vmul.f32 %v2359, %v2513
    %v2546 = vmul.f32 %v2361, %v2514
    %v2547 = vmul.f32 %v2363, %v2515
    %v2548 = vmul.f32 %v2365, %v2516
    %v2549 = vmul.f32 %v2367, %v2517
    %v2550 = vmul.f32 %v2369, %v2518
    %v2551 = vmul.f32 %v2371, %v2519
    %v2552 = vmul.f32 %v2373, %v2520
    %v2553 = vmul.f32 %v2375, %v2521
    %v2554 = vmul.f32 %v2377, %v2522
    %v2555 = vmul.f32 %v2379, %v2523
    %v2556 = vmul.f32 %v2381, %v2524
    %v2557 = vmul.f32 %v2383, %v2525
    %v2558 = vmul.f32 %v2385, %v2526
    %v2559 = vmul.f32 %v2387, %v2527
    %v2560 = vmul.f32 %v2389, %v2528
    %v2561 = vmul.f32 %v2391, %v2529
    %v2562 = vmul.f32 %v2393, %v2530
    %v2563 = vmul.f32 %v2395, %v2531
    %v2564 = vmul.f32 %v2397, %v2532
    %v2565 = vmul.f32 %v2399, %v2533
    %v2566 = vmul.f32 %v2401, %v2534
    %v2567 = vmul.f32 %v2403, %v2535
    %v2568 = vmul.f32 %v2405, %v2536
    %v2569 = vmul.f32 %v2407, %v2537
    %v2570 = vmul.f32 %v2409, %v2538
    %v2571 = vmul.f32 %v2411, %v2539
    %v2572 = vpack.c.bf16 %v2540, %v2540
    %v2573 = vpack.c.bf16 %v2541, %v2541
    %v2574 = vpack.c.bf16 %v2542, %v2542
    %v2575 = vpack.c.bf16 %v2543, %v2543
    %v2576 = vpack.c.bf16 %v2544, %v2544
    %v2577 = vpack.c.bf16 %v2545, %v2545
    %v2578 = vpack.c.bf16 %v2546, %v2546
    %v2579 = vpack.c.bf16 %v2547, %v2547
    %v2580 = vpack.c.bf16 %v2548, %v2548
    %v2581 = vpack.c.bf16 %v2549, %v2549
    %v2582 = vpack.c.bf16 %v2550, %v2550
    %v2583 = vpack.c.bf16 %v2551, %v2551
    %v2584 = vpack.c.bf16 %v2552, %v2552
    %v2585 = vpack.c.bf16 %v2553, %v2553
    %v2586 = vpack.c.bf16 %v2554, %v2554
    %v2587 = vpack.c.bf16 %v2555, %v2555
    %v2588 = vpack.c.bf16 %v2556, %v2556
    %v2589 = vpack.c.bf16 %v2557, %v2557
    %v2590 = vpack.c.bf16 %v2558, %v2558
    %v2591 = vpack.c.bf16 %v2559, %v2559
    %v2592 = vpack.c.bf16 %v2560, %v2560
    %v2593 = vpack.c.bf16 %v2561, %v2561
    %v2594 = vpack.c.bf16 %v2562, %v2562
    %v2595 = vpack.c.bf16 %v2563, %v2563
    %v2596 = vpack.c.bf16 %v2564, %v2564
    %v2597 = vpack.c.bf16 %v2565, %v2565
    %v2598 = vpack.c.bf16 %v2566, %v2566
    %v2599 = vpack.c.bf16 %v2567, %v2567
    %v2600 = vpack.c.bf16 %v2568, %v2568
    %v2601 = vpack.c.bf16 %v2569, %v2569
    %v2602 = vpack.c.bf16 %v2570, %v2570
    %v2603 = vpack.c.bf16 %v2571, %v2571
    %v2604 = vpack.c.bf16 %v1705, %v1705
    %v2605 = vpack.c.bf16 %v1707, %v1707
    %v2606 = vpack.c.bf16 %v1710, %v1710
    %v2607 = vpack.c.bf16 %v1712, %v1712
    %v2608 = vpack.c.bf16 %v1715, %v1715
    %v2609 = vpack.c.bf16 %v1717, %v1717
    %v2610 = vpack.c.bf16 %v1720, %v1720
    %v2611 = vpack.c.bf16 %v1722, %v1722
    %v2612 = vpack.c.bf16 %v1725, %v1725
    %v2613 = vpack.c.bf16 %v1727, %v1727
    %v2614 = vpack.c.bf16 %v1730, %v1730
    %v2615 = vpack.c.bf16 %v1732, %v1732
    %v2616 = vpack.c.bf16 %v1735, %v1735
    %v2617 = vpack.c.bf16 %v1737, %v1737
    %v2618 = vpack.c.bf16 %v1740, %v1740
    %v2619 = vpack.c.bf16 %v1742, %v1742
    %v2620 = vpack.c.bf16 %v1745, %v1745
    %v2621 = vpack.c.bf16 %v1747, %v1747
    %v2622 = vpack.c.bf16 %v1750, %v1750
    %v2623 = vpack.c.bf16 %v1752, %v1752
    %v2624 = vpack.c.bf16 %v1755, %v1755
    %v2625 = vpack.c.bf16 %v1757, %v1757
    %v2626 = vpack.c.bf16 %v1760, %v1760
    %v2627 = vpack.c.bf16 %v1762, %v1762
    %v2628 = vpack.c.bf16 %v1765, %v1765
    %v2629 = vpack.c.bf16 %v1767, %v1767
    %v2630 = vpack.c.bf16 %v1770, %v1770
    %v2631 = vpack.c.bf16 %v1772, %v1772
    %v2632 = vpack.c.bf16 %v1775, %v1775
    %v2633 = vpack.c.bf16 %v1777, %v1777
    %v2634 = vpack.c.bf16 %v1780, %v1780
    %v2635 = vpack.c.bf16 %v1782, %v1782
    %v2644 = vunpack.c.l.b16 %v2572
    %v2645 = vunpack.c.l.b16 %v2573
    %v2646 = vunpack.c.l.b16 %v2574
    %v2647 = vunpack.c.l.b16 %v2575
    %v2648 = vunpack.c.l.b16 %v2576
    %v2649 = vunpack.c.l.b16 %v2577
    %v2650 = vunpack.c.l.b16 %v2578
    %v2651 = vunpack.c.l.b16 %v2579
    %v2652 = vpack.c.b16 %v2645, %v2644
    %v2653 = vpack.c.b16 %v2647, %v2646
    %v2654 = vpack.c.b16 %v2649, %v2648
    %v2655 = vpack.c.b16 %v2651, %v2650
    %v2664 = vunpack.c.l.b16 %v2604
    %v2665 = vunpack.c.l.b16 %v2605
    %v2666 = vunpack.c.l.b16 %v2606
    %v2667 = vunpack.c.l.b16 %v2607
    %v2668 = vunpack.c.l.b16 %v2608
    %v2669 = vunpack.c.l.b16 %v2609
    %v2670 = vunpack.c.l.b16 %v2610
    %v2671 = vunpack.c.l.b16 %v2611
    %v2672 = vpack.c.b16 %v2665, %v2664
    %v2673 = vpack.c.b16 %v2667, %v2666
    %v2674 = vpack.c.b16 %v2669, %v2668
    %v2675 = vpack.c.b16 %v2671, %v2670
    %v2681 = vsel %vm155, %v2652, 0
    %v2684 = vsel %vm155, %v2653, 0
    %v2687 = vsel %vm155, %v2654, 0
    %v2690 = vsel %vm155, %v2655, 0
    %2692 = vmatpush.bf16.msra.mxu0 0
    %2693 = vmatpush.bf16.msra.mxu0 0
    %2694 = vmatpush.bf16.msra.mxu0 0
    %2695 = vmatpush.bf16.msra.mxu0 0
    %2696 = vmatpush.bf16.msra.mxu0 %v2675
    %2697 = vmatpush.bf16.msra.mxu0 %v2674
    %2698 = vmatpush.bf16.msra.mxu0 %v2673
    %2699 = vmatpush.bf16.msra.mxu0 %v2672
    %2700 = vmatmul.bf16.gmra.mxu0 %v2681
    %v2701 = vpop.f32.mrf.mxu0
    %v2702 = vadd.f32 0.0, %v2701
    %v2703 = vpop.f32.mrf.mxu0
    %v2704 = vadd.f32 0.0, %v2703
    %2705 = vmatmul.bf16.gmra.mxu0 %v2684
    %v2706 = vpop.f32.mrf.mxu0
    %v2707 = vadd.f32 0.0, %v2706
    %v2708 = vpop.f32.mrf.mxu0
    %v2709 = vadd.f32 0.0, %v2708
    %2710 = vmatmul.bf16.gmra.mxu0 %v2687
    %v2711 = vpop.f32.mrf.mxu0
    %v2712 = vadd.f32 0.0, %v2711
    %v2713 = vpop.f32.mrf.mxu0
    %v2714 = vadd.f32 0.0, %v2713
    %2715 = vmatmul.bf16.gmra.mxu0 %v2690
    %v2716 = vpop.f32.mrf.mxu0
    %v2717 = vadd.f32 0.0, %v2716
    %v2718 = vpop.f32.mrf.mxu0
    %v2719 = vadd.f32 0.0, %v2718
    %2720 = vdwg.mxu0
    %v2729 = vunpack.c.l.b16 %v2580
    %v2730 = vunpack.c.l.b16 %v2581
    %v2731 = vunpack.c.l.b16 %v2582
    %v2732 = vunpack.c.l.b16 %v2583
    %v2733 = vunpack.c.l.b16 %v2584
    %v2734 = vunpack.c.l.b16 %v2585
    %v2735 = vunpack.c.l.b16 %v2586
    %v2736 = vunpack.c.l.b16 %v2587
    %v2737 = vpack.c.b16 %v2730, %v2729
    %v2738 = vpack.c.b16 %v2732, %v2731
    %v2739 = vpack.c.b16 %v2734, %v2733
    %v2740 = vpack.c.b16 %v2736, %v2735
    %v2749 = vunpack.c.l.b16 %v2612
    %v2750 = vunpack.c.l.b16 %v2613
    %v2751 = vunpack.c.l.b16 %v2614
    %v2752 = vunpack.c.l.b16 %v2615
    %v2753 = vunpack.c.l.b16 %v2616
    %v2754 = vunpack.c.l.b16 %v2617
    %v2755 = vunpack.c.l.b16 %v2618
    %v2756 = vunpack.c.l.b16 %v2619
    %v2757 = vpack.c.b16 %v2750, %v2749
    %v2758 = vpack.c.b16 %v2752, %v2751
    %v2759 = vpack.c.b16 %v2754, %v2753
    %v2760 = vpack.c.b16 %v2756, %v2755
    %v2766 = vsel %vm155, %v2737, 0
    %v2769 = vsel %vm155, %v2738, 0
    %v2772 = vsel %vm155, %v2739, 0
    %v2775 = vsel %vm155, %v2740, 0
    %2777 = vmatpush.bf16.msra.mxu0 0
    %2778 = vmatpush.bf16.msra.mxu0 0
    %2779 = vmatpush.bf16.msra.mxu0 0
    %2780 = vmatpush.bf16.msra.mxu0 0
    %2781 = vmatpush.bf16.msra.mxu0 %v2760
    %2782 = vmatpush.bf16.msra.mxu0 %v2759
    %2783 = vmatpush.bf16.msra.mxu0 %v2758
    %2784 = vmatpush.bf16.msra.mxu0 %v2757
    %2785 = vmatmul.bf16.gmra.mxu0 %v2766
    %v2786 = vpop.f32.mrf.mxu0
    %v2787 = vadd.f32 0.0, %v2786
    %v2788 = vpop.f32.mrf.mxu0
    %v2789 = vadd.f32 0.0, %v2788
    %2790 = vmatmul.bf16.gmra.mxu0 %v2769
    %v2791 = vpop.f32.mrf.mxu0
    %v2792 = vadd.f32 0.0, %v2791
    %v2793 = vpop.f32.mrf.mxu0
    %v2794 = vadd.f32 0.0, %v2793
    %2795 = vmatmul.bf16.gmra.mxu0 %v2772
    %v2796 = vpop.f32.mrf.mxu0
    %v2797 = vadd.f32 0.0, %v2796
    %v2798 = vpop.f32.mrf.mxu0
    %v2799 = vadd.f32 0.0, %v2798
    %2800 = vmatmul.bf16.gmra.mxu0 %v2775
    %v2801 = vpop.f32.mrf.mxu0
    %v2802 = vadd.f32 0.0, %v2801
    %v2803 = vpop.f32.mrf.mxu0
    %v2804 = vadd.f32 0.0, %v2803
    %2805 = vdwg.mxu0
    %v2814 = vunpack.c.l.b16 %v2588
    %v2815 = vunpack.c.l.b16 %v2589
    %v2816 = vunpack.c.l.b16 %v2590
    %v2817 = vunpack.c.l.b16 %v2591
    %v2818 = vunpack.c.l.b16 %v2592
    %v2819 = vunpack.c.l.b16 %v2593
    %v2820 = vunpack.c.l.b16 %v2594
    %v2821 = vunpack.c.l.b16 %v2595
    %v2822 = vpack.c.b16 %v2815, %v2814
    %v2823 = vpack.c.b16 %v2817, %v2816
    %v2824 = vpack.c.b16 %v2819, %v2818
    %v2825 = vpack.c.b16 %v2821, %v2820
    %v2834 = vunpack.c.l.b16 %v2620
    %v2835 = vunpack.c.l.b16 %v2621
    %v2836 = vunpack.c.l.b16 %v2622
    %v2837 = vunpack.c.l.b16 %v2623
    %v2838 = vunpack.c.l.b16 %v2624
    %v2839 = vunpack.c.l.b16 %v2625
    %v2840 = vunpack.c.l.b16 %v2626
    %v2841 = vunpack.c.l.b16 %v2627
    %v2842 = vpack.c.b16 %v2835, %v2834
    %v2843 = vpack.c.b16 %v2837, %v2836
    %v2844 = vpack.c.b16 %v2839, %v2838
    %v2845 = vpack.c.b16 %v2841, %v2840
    %v2851 = vsel %vm155, %v2822, 0
    %v2854 = vsel %vm155, %v2823, 0
    %v2857 = vsel %vm155, %v2824, 0
    %v2860 = vsel %vm155, %v2825, 0
    %2862 = vmatpush.bf16.msra.mxu0 0
    %2863 = vmatpush.bf16.msra.mxu0 0
    %2864 = vmatpush.bf16.msra.mxu0 0
    %2865 = vmatpush.bf16.msra.mxu0 0
    %2866 = vmatpush.bf16.msra.mxu0 %v2845
    %2867 = vmatpush.bf16.msra.mxu0 %v2844
    %2868 = vmatpush.bf16.msra.mxu0 %v2843
    %2869 = vmatpush.bf16.msra.mxu0 %v2842
    %2870 = vmatmul.bf16.gmra.mxu0 %v2851
    %v2871 = vpop.f32.mrf.mxu0
    %v2872 = vadd.f32 0.0, %v2871
    %v2873 = vpop.f32.mrf.mxu0
    %v2874 = vadd.f32 0.0, %v2873
    %2875 = vmatmul.bf16.gmra.mxu0 %v2854
    %v2876 = vpop.f32.mrf.mxu0
    %v2877 = vadd.f32 0.0, %v2876
    %v2878 = vpop.f32.mrf.mxu0
    %v2879 = vadd.f32 0.0, %v2878
    %2880 = vmatmul.bf16.gmra.mxu0 %v2857
    %v2881 = vpop.f32.mrf.mxu0
    %v2882 = vadd.f32 0.0, %v2881
    %v2883 = vpop.f32.mrf.mxu0
    %v2884 = vadd.f32 0.0, %v2883
    %2885 = vmatmul.bf16.gmra.mxu0 %v2860
    %v2886 = vpop.f32.mrf.mxu0
    %v2887 = vadd.f32 0.0, %v2886
    %v2888 = vpop.f32.mrf.mxu0
    %v2889 = vadd.f32 0.0, %v2888
    %2890 = vdwg.mxu0
    %v2899 = vunpack.c.l.b16 %v2596
    %v2900 = vunpack.c.l.b16 %v2597
    %v2901 = vunpack.c.l.b16 %v2598
    %v2902 = vunpack.c.l.b16 %v2599
    %v2903 = vunpack.c.l.b16 %v2600
    %v2904 = vunpack.c.l.b16 %v2601
    %v2905 = vunpack.c.l.b16 %v2602
    %v2906 = vunpack.c.l.b16 %v2603
    %v2907 = vpack.c.b16 %v2900, %v2899
    %v2908 = vpack.c.b16 %v2902, %v2901
    %v2909 = vpack.c.b16 %v2904, %v2903
    %v2910 = vpack.c.b16 %v2906, %v2905
    %v2919 = vunpack.c.l.b16 %v2628
    %v2920 = vunpack.c.l.b16 %v2629
    %v2921 = vunpack.c.l.b16 %v2630
    %v2922 = vunpack.c.l.b16 %v2631
    %v2923 = vunpack.c.l.b16 %v2632
    %v2924 = vunpack.c.l.b16 %v2633
    %v2925 = vunpack.c.l.b16 %v2634
    %v2926 = vunpack.c.l.b16 %v2635
    %v2927 = vpack.c.b16 %v2920, %v2919
    %v2928 = vpack.c.b16 %v2922, %v2921
    %v2929 = vpack.c.b16 %v2924, %v2923
    %v2930 = vpack.c.b16 %v2926, %v2925
    %v2936 = vsel %vm155, %v2907, 0
    %v2939 = vsel %vm155, %v2908, 0
    %v2942 = vsel %vm155, %v2909, 0
    %v2945 = vsel %vm155, %v2910, 0
    %2947 = vmatpush.bf16.msra.mxu0 0
    %2948 = vmatpush.bf16.msra.mxu0 0
    %2949 = vmatpush.bf16.msra.mxu0 0
    %2950 = vmatpush.bf16.msra.mxu0 0
    %2951 = vmatpush.bf16.msra.mxu0 %v2930
    %2952 = vmatpush.bf16.msra.mxu0 %v2929
    %2953 = vmatpush.bf16.msra.mxu0 %v2928
    %2954 = vmatpush.bf16.msra.mxu0 %v2927
    %2955 = vmatmul.bf16.gmra.mxu0 %v2936
    %v2956 = vpop.f32.mrf.mxu0
    %v2957 = vadd.f32 0.0, %v2956
    %v2958 = vpop.f32.mrf.mxu0
    %v2959 = vadd.f32 0.0, %v2958
    %2960 = vmatmul.bf16.gmra.mxu0 %v2939
    %v2961 = vpop.f32.mrf.mxu0
    %v2962 = vadd.f32 0.0, %v2961
    %v2963 = vpop.f32.mrf.mxu0
    %v2964 = vadd.f32 0.0, %v2963
    %2965 = vmatmul.bf16.gmra.mxu0 %v2942
    %v2966 = vpop.f32.mrf.mxu0
    %v2967 = vadd.f32 0.0, %v2966
    %v2968 = vpop.f32.mrf.mxu0
    %v2969 = vadd.f32 0.0, %v2968
    %2970 = vmatmul.bf16.gmra.mxu0 %v2945
    %v2971 = vpop.f32.mrf.mxu0
    %v2972 = vadd.f32 0.0, %v2971
    %v2973 = vpop.f32.mrf.mxu0
    %v2974 = vadd.f32 0.0, %v2973
    %2975 = vdwg.mxu0
    %v2976 = vpack.c.bf16 %v2704, %v2702
    %v2977 = vpack.c.bf16 %v2709, %v2707
    %v2978 = vpack.c.bf16 %v2714, %v2712
    %v2979 = vpack.c.bf16 %v2719, %v2717
    %v2980 = vpack.c.bf16 %v2789, %v2787
    %v2981 = vpack.c.bf16 %v2794, %v2792
    %v2982 = vpack.c.bf16 %v2799, %v2797
    %v2983 = vpack.c.bf16 %v2804, %v2802
    %v2984 = vpack.c.bf16 %v2874, %v2872
    %v2985 = vpack.c.bf16 %v2879, %v2877
    %v2986 = vpack.c.bf16 %v2884, %v2882
    %v2987 = vpack.c.bf16 %v2889, %v2887
    %v2988 = vpack.c.bf16 %v2959, %v2957
    %v2989 = vpack.c.bf16 %v2964, %v2962
    %v2990 = vpack.c.bf16 %v2969, %v2967
    %v2991 = vpack.c.bf16 %v2974, %v2972
    %v2992 = vld [vmem:[#allocation7] sm:$0xf]
    %v2993 = vld [vmem:[#allocation7 + $0x4] sm:$0xf]
    %v2994 = vld [vmem:[#allocation7 + $0x8] sm:$0xf]
    %v2995 = vld [vmem:[#allocation7 + $0xc] sm:$0xf]
    %v2996 = vld [vmem:[#allocation7 + $0x10] sm:$0xf]
    %v2997 = vld [vmem:[#allocation7 + $0x14] sm:$0xf]
    %v2998 = vld [vmem:[#allocation7 + $0x18] sm:$0xf]
    %v2999 = vld [vmem:[#allocation7 + $0x1c] sm:$0xf]
    %v3000 = vld [vmem:[%s6] sm:$0x1]
    %v3002 = vperm.slane %v3000, 0
    %v3012 = vunpack.c.l.b16 %v2992
    %v3013 = vunpack.c.l.b16 %v2993
    %v3014 = vunpack.c.l.b16 %v2994
    %v3015 = vunpack.c.l.b16 %v2995
    %v3016 = vunpack.c.l.b16 %v2996
    %v3017 = vunpack.c.l.b16 %v2997
    %v3018 = vunpack.c.l.b16 %v2998
    %v3019 = vunpack.c.l.b16 %v2999
    %v3020 = vpack.c.b16 %v3013, %v3012
    %v3021 = vpack.c.b16 %v3015, %v3014
    %v3022 = vpack.c.b16 %v3017, %v3016
    %v3023 = vpack.c.b16 %v3019, %v3018
    %v3029 = vsel %vm155, %v2976, 0
    %v3032 = vsel %vm155, %v2977, 0
    %v3035 = vsel %vm155, %v2978, 0
    %v3038 = vsel %vm155, %v2979, 0
    %v3041 = vsel %vm155, %v2980, 0
    %v3044 = vsel %vm155, %v2981, 0
    %v3047 = vsel %vm155, %v2982, 0
    %v3050 = vsel %vm155, %v2983, 0
    %v3053 = vsel %vm155, %v2984, 0
    %v3056 = vsel %vm155, %v2985, 0
    %v3059 = vsel %vm155, %v2986, 0
    %v3062 = vsel %vm155, %v2987, 0
    %v3065 = vsel %vm155, %v2988, 0
    %v3068 = vsel %vm155, %v2989, 0
    %v3071 = vsel %vm155, %v2990, 0
    %v3074 = vsel %vm155, %v2991, 0
    %3076 = vmatpush.bf16.msra.mxu0 0
    %3077 = vmatpush.bf16.msra.mxu0 0
    %3078 = vmatpush.bf16.msra.mxu0 0
    %3079 = vmatpush.bf16.msra.mxu0 0
    %3080 = vmatpush.bf16.msra.mxu0 %v3023
    %3081 = vmatpush.bf16.msra.mxu0 %v3022
    %3082 = vmatpush.bf16.msra.mxu0 %v3021
    %3083 = vmatpush.bf16.msra.mxu0 %v3020
    %3084 = vmatmul.bf16.gmra.mxu0 %v3029
    %v3085 = vpop.f32.mrf.mxu0
    %v3086 = vadd.f32 %v3002, %v3085
    %v3087 = vpop.f32.mrf.mxu0
    %v3088 = vadd.f32 %v3002, %v3087
    %3089 = vmatmul.bf16.gmra.mxu0 %v3032
    %v3090 = vpop.f32.mrf.mxu0
    %v3091 = vadd.f32 %v3002, %v3090
    %v3092 = vpop.f32.mrf.mxu0
    %v3093 = vadd.f32 %v3002, %v3092
    %3094 = vmatmul.bf16.gmra.mxu0 %v3035
    %v3095 = vpop.f32.mrf.mxu0
    %v3096 = vadd.f32 %v3002, %v3095
    %v3097 = vpop.f32.mrf.mxu0
    %v3098 = vadd.f32 %v3002, %v3097
    %3099 = vmatmul.bf16.gmra.mxu0 %v3038
    %v3100 = vpop.f32.mrf.mxu0
    %v3101 = vadd.f32 %v3002, %v3100
    %v3102 = vpop.f32.mrf.mxu0
    %v3103 = vadd.f32 %v3002, %v3102
    %3104 = vmatmul.bf16.gmra.mxu0 %v3041
    %v3105 = vpop.f32.mrf.mxu0
    %v3106 = vadd.f32 %v3002, %v3105
    %v3107 = vpop.f32.mrf.mxu0
    %v3108 = vadd.f32 %v3002, %v3107
    %3109 = vmatmul.bf16.gmra.mxu0 %v3044
    %v3110 = vpop.f32.mrf.mxu0
    %v3111 = vadd.f32 %v3002, %v3110
    %v3112 = vpop.f32.mrf.mxu0
    %v3113 = vadd.f32 %v3002, %v3112
    %3114 = vmatmul.bf16.gmra.mxu0 %v3047
    %v3115 = vpop.f32.mrf.mxu0
    %v3116 = vadd.f32 %v3002, %v3115
    %v3117 = vpop.f32.mrf.mxu0
    %v3118 = vadd.f32 %v3002, %v3117
    %3119 = vmatmul.bf16.gmra.mxu0 %v3050
    %v3120 = vpop.f32.mrf.mxu0
    %v3121 = vadd.f32 %v3002, %v3120
    %v3122 = vpop.f32.mrf.mxu0
    %v3123 = vadd.f32 %v3002, %v3122
    %3124 = vmatmul.bf16.gmra.mxu0 %v3053
    %v3125 = vpop.f32.mrf.mxu0
    %v3126 = vadd.f32 %v3002, %v3125
    %v3127 = vpop.f32.mrf.mxu0
    %v3128 = vadd.f32 %v3002, %v3127
    %3129 = vmatmul.bf16.gmra.mxu0 %v3056
    %v3130 = vpop.f32.mrf.mxu0
    %v3131 = vadd.f32 %v3002, %v3130
    %v3132 = vpop.f32.mrf.mxu0
    %v3133 = vadd.f32 %v3002, %v3132
    %3134 = vmatmul.bf16.gmra.mxu0 %v3059
    %v3135 = vpop.f32.mrf.mxu0
    %v3136 = vadd.f32 %v3002, %v3135
    %v3137 = vpop.f32.mrf.mxu0
    %v3138 = vadd.f32 %v3002, %v3137
    %3139 = vmatmul.bf16.gmra.mxu0 %v3062
    %v3140 = vpop.f32.mrf.mxu0
    %v3141 = vadd.f32 %v3002, %v3140
    %v3142 = vpop.f32.mrf.mxu0
    %v3143 = vadd.f32 %v3002, %v3142
    %3144 = vmatmul.bf16.gmra.mxu0 %v3065
    %v3145 = vpop.f32.mrf.mxu0
    %v3146 = vadd.f32 %v3002, %v3145
    %v3147 = vpop.f32.mrf.mxu0
    %v3148 = vadd.f32 %v3002, %v3147
    %3149 = vmatmul.bf16.gmra.mxu0 %v3068
    %v3150 = vpop.f32.mrf.mxu0
    %v3151 = vadd.f32 %v3002, %v3150
    %v3152 = vpop.f32.mrf.mxu0
    %v3153 = vadd.f32 %v3002, %v3152
    %3154 = vmatmul.bf16.gmra.mxu0 %v3071
    %v3155 = vpop.f32.mrf.mxu0
    %v3156 = vadd.f32 %v3002, %v3155
    %v3157 = vpop.f32.mrf.mxu0
    %v3158 = vadd.f32 %v3002, %v3157
    %3159 = vmatmul.bf16.gmra.mxu0 %v3074
    %v3160 = vpop.f32.mrf.mxu0
    %v3161 = vadd.f32 %v3002, %v3160
    %v3162 = vpop.f32.mrf.mxu0
    %v3163 = vadd.f32 %v3002, %v3162
    %3164 = vdwg.mxu0
    %v3165 = vadd.f32 %v75, %v3086
    %v3166 = vadd.f32 %v76, %v3088
    %v3167 = vadd.f32 %v77, %v3091
    %v3168 = vadd.f32 %v78, %v3093
    %v3169 = vadd.f32 %v108, %v3096
    %v3170 = vadd.f32 %v110, %v3098
    %v3171 = vadd.f32 %v112, %v3101
    %v3172 = vadd.f32 %v114, %v3103
    %v3173 = vadd.f32 %v79, %v3106
    %v3174 = vadd.f32 %v80, %v3108
    %v3175 = vadd.f32 %v81, %v3111
    %v3176 = vadd.f32 %v82, %v3113
    %v3177 = vadd.f32 %v116, %v3116
    %v3178 = vadd.f32 %v118, %v3118
    %v3179 = vadd.f32 %v120, %v3121
    %v3180 = vadd.f32 %v122, %v3123
    %v3181 = vadd.f32 %v83, %v3126
    %v3182 = vadd.f32 %v84, %v3128
    %v3183 = vadd.f32 %v85, %v3131
    %v3184 = vadd.f32 %v86, %v3133
    %v3185 = vadd.f32 %v124, %v3136
    %v3186 = vadd.f32 %v126, %v3138
    %v3187 = vadd.f32 %v128, %v3141
    %v3188 = vadd.f32 %v130, %v3143
    %v3189 = vadd.f32 %v87, %v3146
    %v3190 = vadd.f32 %v88, %v3148
    %v3191 = vadd.f32 %v89, %v3151
    %v3192 = vadd.f32 %v90, %v3153
    %v3193 = vadd.f32 %v132, %v3156
    %v3194 = vadd.f32 %v134, %v3158
    %v3195 = vadd.f32 %v136, %v3161
    %v3196 = vadd.f32 %v138, %v3163
    %3213 = vrot.lane.b32.xlu0 %v3169, 64
    %v3214 = vpop.permute.xlu0 %3213
    %3215 = vrot.lane.b32.xlu0 %v3170, 64
    %v3216 = vpop.permute.xlu0 %3215
    %3217 = vrot.lane.b32.xlu0 %v3171, 64
    %v3218 = vpop.permute.xlu0 %3217
    %3219 = vrot.lane.b32.xlu0 %v3172, 64
    %v3220 = vpop.permute.xlu0 %3219
    %3221 = vrot.lane.b32.xlu0 %v3177, 64
    %v3222 = vpop.permute.xlu0 %3221
    %3223 = vrot.lane.b32.xlu0 %v3178, 64
    %v3224 = vpop.permute.xlu0 %3223
    %3225 = vrot.lane.b32.xlu0 %v3179, 64
    %v3226 = vpop.permute.xlu0 %3225
    %3227 = vrot.lane.b32.xlu0 %v3180, 64
    %v3228 = vpop.permute.xlu0 %3227
    %3229 = vrot.lane.b32.xlu0 %v3185, 64
    %v3230 = vpop.permute.xlu0 %3229
    %3231 = vrot.lane.b32.xlu0 %v3186, 64
    %v3232 = vpop.permute.xlu0 %3231
    %3233 = vrot.lane.b32.xlu0 %v3187, 64
    %v3234 = vpop.permute.xlu0 %3233
    %3235 = vrot.lane.b32.xlu0 %v3188, 64
    %v3236 = vpop.permute.xlu0 %3235
    %3237 = vrot.lane.b32.xlu0 %v3193, 64
    %v3238 = vpop.permute.xlu0 %3237
    %3239 = vrot.lane.b32.xlu0 %v3194, 64
    %v3240 = vpop.permute.xlu0 %3239
    %3241 = vrot.lane.b32.xlu0 %v3195, 64
    %v3242 = vpop.permute.xlu0 %3241
    %3243 = vrot.lane.b32.xlu0 %v3196, 64
    %v3244 = vpop.permute.xlu0 %3243
    %v3261 = vsel %vm155, %v3165, %v3214
    %v3262 = vsel %vm155, %v3166, %v3216
    %v3263 = vsel %vm155, %v3167, %v3218
    %v3264 = vsel %vm155, %v3168, %v3220
    %v3265 = vsel %vm155, %v3173, %v3222
    %v3266 = vsel %vm155, %v3174, %v3224
    %v3267 = vsel %vm155, %v3175, %v3226
    %v3268 = vsel %vm155, %v3176, %v3228
    %v3269 = vsel %vm155, %v3181, %v3230
    %v3270 = vsel %vm155, %v3182, %v3232
    %v3271 = vsel %vm155, %v3183, %v3234
    %v3272 = vsel %vm155, %v3184, %v3236
    %v3273 = vsel %vm155, %v3189, %v3238
    %v3274 = vsel %vm155, %v3190, %v3240
    %v3275 = vsel %vm155, %v3191, %v3242
    %v3276 = vsel %vm155, %v3192, %v3244
    %3277 = vst [vmem:[#allocation8] sm:$0xff] %v3261
    %3278 = vst [vmem:[#allocation8 + $0x8] sm:$0xff] %v3262
    %3279 = vst [vmem:[#allocation8 + $0x10] sm:$0xff] %v3263
    %3280 = vst [vmem:[#allocation8 + $0x18] sm:$0xff] %v3264
    %3281 = vst [vmem:[#allocation8 + $0x20] sm:$0xff] %v3265
    %3282 = vst [vmem:[#allocation8 + $0x28] sm:$0xff] %v3266
    %3283 = vst [vmem:[#allocation8 + $0x30] sm:$0xff] %v3267
    %3284 = vst [vmem:[#allocation8 + $0x38] sm:$0xff] %v3268
    %3285 = vst [vmem:[#allocation8 + $0x40] sm:$0xff] %v3269
    %3286 = vst [vmem:[#allocation8 + $0x48] sm:$0xff] %v3270
    %3287 = vst [vmem:[#allocation8 + $0x50] sm:$0xff] %v3271
    %3288 = vst [vmem:[#allocation8 + $0x58] sm:$0xff] %v3272
    %3289 = vst [vmem:[#allocation8 + $0x60] sm:$0xff] %v3273
    %3290 = vst [vmem:[#allocation8 + $0x68] sm:$0xff] %v3274
    %3291 = vst [vmem:[#allocation8 + $0x70] sm:$0xff] %v3275
    %3292 = vst [vmem:[#allocation8 + $0x78] sm:$0xff] %v3276
    // Predicated region
    $region42: #{tpu_custom_call.1} parent=1 // pred_check
      _
    $region43: #{tpu_custom_call.1} parent=1 // pred_check_branch
      %3294 = sbr.rel (0) target = $region45
    $region44: #{tpu_custom_call.1} parent=1 // pred_region
      %3296 = vsyncadd [#allocation4], 0
      %s3297 = sshll.u32 [#allocation8], 4
      %s3298 = int_to_ptr.vmem [resolvable:$true] %s3297
      %s3299 = sshll.u32 %s7, 4
      %s3300 = int_to_ptr.hbm [resolvable:$true] %s3299
      %3305 = dma.vmem_to_hbm [thread:$0]  %s3298, 2048, %s3300, [#allocation4], 128, 128, 8
    $region45: #{tpu_custom_call.1} parent=1 // pred_fallthru
      _
    // Predicated region
    $region46: #{tpu_custom_call.1} parent=1 // pred_check
      _
    $region47: #{tpu_custom_call.1} parent=1 // pred_check_branch
      %3307 = sbr.rel (0) target = $region49
    $region48: #{tpu_custom_call.1} parent=1 // pred_region
      %3309 = dma.done [#allocation4], 2048
    $region49: #{tpu_custom_call.1} parent=1 // pred_fallthru
      _
    %3310 = vsyncpa [#allocation3], 1
    %3311 = vsyncpa [#allocation6], 1
    %3312 = vsyncpa [#allocation4], 1

</llo_original>
